<compile_context>
chip_gen: v7x
topology: tpu7x:2x2x1
jax: 0.10.0
libtpu: 0.0.40
codegen_flags: <defaults>
</compile_context>

<pallas_src>
import numpy as np
import jax
import jax.numpy as jnp
from jax import lax
from jax.experimental import pallas as pl
from jax.experimental.pallas import tpu as pltpu


# -----------------------------------------------------------------------------
# Glue (plain NumPy): grid, equilibrium phi, tridiagonal coefficients, dt list.
# These mirror dadi.Numerics.default_grid / PhiManip.phi_1D /
# Integration._one_pop_const_params *setup*; the time loop itself is the kernel.
# -----------------------------------------------------------------------------
def default_grid(pts, crwd=8.0):
    # TODO(synk): exact dadi.Numerics.default_grid formula unavailable here;
    # logistic grid crowded near x=0 and x=1 with the same signature.
    unif = np.linspace(-1.0, 1.0, pts)
    grid = 1.0 / (1.0 + np.exp(-crwd * unif))
    grid = (grid - grid[0]) / (grid[-1] - grid[0])
    return grid


def phi_1D(xx, theta0=1.0):
    # Neutral 1-D equilibrium density ~ theta0 / x, regularized at x = 0.
    phi = np.empty_like(xx)
    phi[1:] = theta0 / xx[1:]
    phi[0] = phi[1]
    return phi


def tridiag_coeffs(xx, nu):
    # dadi Integration._one_pop_const_params with gamma=0, h=0.5, beta=1.
    N = xx.shape[0]
    V = xx * (1.0 - xx) / nu
    dx = np.diff(xx)
    dfactor = np.zeros(N)
    dfactor[1:-1] = 2.0 / (dx[:-1] + dx[1:])
    dfactor[0] = 2.0 / dx[0]
    dfactor[-1] = 2.0 / dx[-1]
    delj = 0.5
    MInt = np.zeros(N - 1)  # gamma = 0 -> no drift term

    a = np.zeros(N)
    a[1:] += dfactor[1:] * (-MInt * delj - V[:-1] / (2.0 * dx))
    c = np.zeros(N)
    c[:-1] += -dfactor[:-1] * (-MInt * (1.0 - delj) + V[1:] / (2.0 * dx))
    b = np.zeros(N)
    b[:-1] += -dfactor[:-1] * (-MInt * delj - V[:-1] / (2.0 * dx))
    b[1:] += dfactor[1:] * (-MInt * (1.0 - delj) + V[1:] / (2.0 * dx))
    # Boundary conditions (M[0] = M[-1] = 0 for gamma = 0).
    b[0] += (0.5 / nu) * 2.0 / dx[0]
    b[-1] += -(-0.5 / nu) * 2.0 / dx[-1]
    return a, b, c


def time_steps(T, nu, timescale_factor=1e-3, initial_t=0.0):
    # NOTE: the final this_dt = T - t can be arbitrarily small (ill-conditioned
    # 1/dt in f32); kept as-is to match dadi's stepping semantics.
    dt = timescale_factor / (0.25 / nu)
    dts, t = [], initial_t
    while t < T:
        this_dt = min(dt, T - t)
        dts.append(this_dt)
        t += this_dt
    return np.asarray(dts, dtype=np.float64)


# -----------------------------------------------------------------------------
# Pallas kernel: sequential time stepping + Thomas tridiagonal solve in SMEM.
# All per-grid-point work is scalar; the recurrence carries (cp, dp, phi_next)
# stay in scalar registers, SMEM is touched with static indices only.
# -----------------------------------------------------------------------------
def _one_pop_kernel(phi0_ref, xx_ref, a_ref, b_ref, c_ref, dts_ref,
                    phi_out_ref, phi_inj_ref,
                    cp, dp):
    N = phi0_ref.shape[0]
    nsteps = dts_ref.shape[0]

    # phi_out_ref doubles as the working phi buffer (no separate scratch,
    # no final copy-out loop).
    for i in range(N):
        phi_out_ref[i] = phi0_ref[i]

    # dadi _inject_mutations_1D: phi[1] += dt/xx[1] * theta0/2 * 2/(xx[2]-xx[0])
    inj_coeff = (1.0 / xx_ref[1]) * 0.5 * 2.0 / (xx_ref[2] - xx_ref[0])  # theta0 = 1

    def step(s, carry):
        dt = dts_ref[s]
        inv_dt = 1.0 / dt

        # Mutation injection.
        phi_out_ref[1] = phi_out_ref[1] + dt * inj_coeff

        # phi_inj is only ever observed for the final step -> gate the copy.
        @pl.when(s == nsteps - 1)
        def _():
            for i in range(N):
                phi_inj_ref[i] = phi_out_ref[i]

        # ---- Thomas forward sweep: (a, b + 1/dt, c) x = phi/dt -------------
        # Single reciprocal per iteration; cp_prev/dp_prev carried in sregs.
        inv_b0 = 1.0 / (b_ref[0] + inv_dt)
        cp_prev = c_ref[0] * inv_b0
        dp_prev = phi_out_ref[0] * inv_dt * inv_b0
        cp[0] = cp_prev
        dp[0] = dp_prev
        for i in range(1, N):  # static trip count -> fully unrolled
            a_i = a_ref[i]
            inv_denom = 1.0 / ((b_ref[i] + inv_dt) - a_i * cp_prev)
            cp_prev = c_ref[i] * inv_denom
            dp_prev = (phi_out_ref[i] * inv_dt - a_i * dp_prev) * inv_denom
            cp[i] = cp_prev
            dp[i] = dp_prev

        # ---- Thomas backward sweep: phi_next carried in an sreg ------------
        phi_next = dp_prev
        phi_out_ref[N - 1] = phi_next
        for i in range(N - 2, -1, -1):  # static trip count -> fully unrolled
            phi_next = dp[i] - cp[i] * phi_next
            phi_out_ref[i] = phi_next

        return carry

    lax.fori_loop(0, nsteps, step, 0)


def _one_pop_pallas_impl(phi0, xx, a, b, c, dts):
    N = phi0.shape[0]
    smem = pl.BlockSpec(memory_space=pltpu.MemorySpace.SMEM)
    return pl.pallas_call(
        _one_pop_kernel,
        out_shape=(jax.ShapeDtypeStruct((N,), jnp.float32),
                   jax.ShapeDtypeStruct((N,), jnp.float32)),
        in_specs=[smem] * 6,
        out_specs=(smem, smem),
        scratch_shapes=[pltpu.SMEM((N,), jnp.float32),   # c' (Thomas)
                        pltpu.SMEM((N,), jnp.float32)],  # d' (Thomas)
    )(phi0, xx, a, b, c, dts)


# Jitted so repeated forward() calls hit the compile/dispatch cache.
one_pop_pallas = jax.jit(_one_pop_pallas_impl)


# -----------------------------------------------------------------------------
# Thin class mirroring AdjointStateMethod's __init__/forward state handling.
# -----------------------------------------------------------------------------
class AdjointStateMethodPallas:
    def __init__(self, p0, ns, pts, lower_bound, upper_bound):
        self.pts = pts
        self.ns = ns
        self.lower_bound = lower_bound
        self.upper_bound = upper_bound
        # torch: p_temp.unsqueeze_(1) -> column vector of parameters [nu, T].
        self.p0 = np.asarray(p0, dtype=np.float64).reshape(-1, 1)
        self.xx = default_grid(pts)
        self.phi = phi_1D(self.xx)
        self.F = np.zeros_like(self.phi)
        # Device-resident copies of the parameter-independent state.
        self._phi_dev = jnp.asarray(self.phi, jnp.float32)
        self._xx_dev = jnp.asarray(self.xx, jnp.float32)
        self._coeff_key = None
        self._coeff_dev = None
        # TODO(synk): likelihood (Inference.ll_multinom) / Spectrum.from_phi and
        # the scipy numerical derivative in compute_derivatives_* have no Pallas
        # equivalent here and are outside forward().

    def _coeffs(self, nu, T):
        # Cache device-resident tridiagonal coefficients / dt schedule so the
        # (many) forward() calls of the adjoint optimization loop don't
        # re-transfer or recompute when the parameters are unchanged.
        key = (float(nu), float(T))
        if self._coeff_key != key:
            a, b, c = tridiag_coeffs(self.xx, nu)
            dts = time_steps(T, nu)
            self._coeff_dev = (jnp.asarray(a, jnp.float32),
                               jnp.asarray(b, jnp.float32),
                               jnp.asarray(c, jnp.float32),
                               jnp.asarray(dts, jnp.float32))
            self._coeff_key = key
        return self._coeff_dev

    def forward(self):
        nu = float(self.p0[0, 0])
        T = float(self.p0[-1, 0])
        a_d, b_d, c_d, dts_d = self._coeffs(nu, T)
        phi, phi_inj = one_pop_pallas(self._phi_dev, self._xx_dev,
                                      a_d, b_d, c_d, dts_d)
        self.phi_out, self.phi_inj = phi, phi_inj
        return phi, phi_inj


# -----------------------------------------------------------------------------
# NumPy float64 reference of the same integration (for a correctness check).
# -----------------------------------------------------------------------------
def _thomas(a, b, c, d):
    n = len(d)
    cp = np.zeros(n)
    dp = np.zeros(n)
    cp[0] = c[0] / b[0]
    dp[0] = d[0] / b[0]
    for i in range(1, n):
        denom = b[i] - a[i] * cp[i - 1]
        cp[i] = c[i] / denom
        dp[i] = (d[i] - a[i] * dp[i - 1]) / denom
    x = np.zeros(n)
    x[-1] = dp[-1]
    for i in range(n - 2, -1, -1):
        x[i] = dp[i] - cp[i] * x[i + 1]
    return x


def one_pop_reference(phi0, xx, a, b, c, dts):
    phi = phi0.astype(np.float64).copy()
    phi_inj = phi.copy()
    for dt in dts:
        phi[1] += dt / xx[1] * 0.5 * 2.0 / (xx[2] - xx[0])
        phi_inj = phi.copy()
        phi = _thomas(a, b + 1.0 / dt, c, phi / dt)
    return phi, phi_inj


if __name__ == "__main__":
    key = jax.random.PRNGKey(0)
    pts = 20          # grid points (dadi `pts`)
    ns = [8]          # single population -> forward() takes the one_pop branch
    base = np.array([2.0, 0.1])  # two_epoch params [nu, T]
    jitter = np.asarray(jax.random.uniform(key, (2,), minval=0.95, maxval=1.05))
    p0 = base * jitter
    lower_bound = [1e-2, 1e-3]
    upper_bound = [100.0, 5.0]

    asm = AdjointStateMethodPallas(p0, ns, pts, lower_bound, upper_bound)
    phi, phi_inj = asm.forward()
    phi = jax.block_until_ready(phi)
    phi_inj = jax.block_until_ready(phi_inj)

    # Reference check (float64 NumPy vs float32 Pallas).
    nu = float(asm.p0[0, 0])
    T = float(asm.p0[-1, 0])
    a, b, c = tridiag_coeffs(asm.xx, nu)
    dts = time_steps(T, nu)
    phi_ref, phi_inj_ref = one_pop_reference(asm.phi, asm.xx, a, b, c, dts)

    phi_np = np.asarray(phi, dtype=np.float64)
    phi_inj_np = np.asarray(phi_inj, dtype=np.float64)
    assert np.all(np.isfinite(phi_np)) and np.all(np.isfinite(phi_inj_np))
    rel_phi = np.max(np.abs(phi_np - phi_ref) / (np.abs(phi_ref) + 1e-6))
    rel_inj = np.max(np.abs(phi_inj_np - phi_inj_ref) / (np.abs(phi_inj_ref) + 1e-6))
    assert rel_phi < 1e-2 and rel_inj < 1e-2, (rel_phi, rel_inj)

    print("KERNEL_OK")
</pallas_src>

<mosaic_0001>
module attributes {stable_mosaic.version = 11 : i64} {
  func.func @_one_pop_kernel(%arg0: memref<20xf32, #tpu.memory_space<smem>>, %arg1: memref<20xf32, #tpu.memory_space<smem>>, %arg2: memref<20xf32, #tpu.memory_space<smem>>, %arg3: memref<20xf32, #tpu.memory_space<smem>>, %arg4: memref<20xf32, #tpu.memory_space<smem>>, %arg5: memref<13xf32, #tpu.memory_space<smem>>, %arg6: memref<20xf32, #tpu.memory_space<smem>>, %arg7: memref<20xf32, #tpu.memory_space<smem>>, %arg8: memref<20xf32, #tpu.memory_space<smem>>, %arg9: memref<20xf32, #tpu.memory_space<smem>>) attributes {dimension_semantics = [], scalar_prefetch = 0 : i64, scratch_operands = 2 : i64, tpu.core_type = #tpu.core_type<tc>} {
    %c0 = arith.constant 0 : index
    %0 = memref.load %arg0[%c0] : memref<20xf32, #tpu.memory_space<smem>>
    %c0_0 = arith.constant 0 : index
    %1 = memref.load %arg6[%c0_0] : memref<20xf32, #tpu.memory_space<smem>>
    memref.store %0, %arg6[%c0_0] : memref<20xf32, #tpu.memory_space<smem>>
    %c1 = arith.constant 1 : index
    %2 = memref.load %arg0[%c1] : memref<20xf32, #tpu.memory_space<smem>>
    %c1_1 = arith.constant 1 : index
    %3 = memref.load %arg6[%c1_1] : memref<20xf32, #tpu.memory_space<smem>>
    memref.store %2, %arg6[%c1_1] : memref<20xf32, #tpu.memory_space<smem>>
    %c2 = arith.constant 2 : index
    %4 = memref.load %arg0[%c2] : memref<20xf32, #tpu.memory_space<smem>>
    %c2_2 = arith.constant 2 : index
    %5 = memref.load %arg6[%c2_2] : memref<20xf32, #tpu.memory_space<smem>>
    memref.store %4, %arg6[%c2_2] : memref<20xf32, #tpu.memory_space<smem>>
    %c3 = arith.constant 3 : index
    %6 = memref.load %arg0[%c3] : memref<20xf32, #tpu.memory_space<smem>>
    %c3_3 = arith.constant 3 : index
    %7 = memref.load %arg6[%c3_3] : memref<20xf32, #tpu.memory_space<smem>>
    memref.store %6, %arg6[%c3_3] : memref<20xf32, #tpu.memory_space<smem>>
    %c4 = arith.constant 4 : index
    %8 = memref.load %arg0[%c4] : memref<20xf32, #tpu.memory_space<smem>>
    %c4_4 = arith.constant 4 : index
    %9 = memref.load %arg6[%c4_4] : memref<20xf32, #tpu.memory_space<smem>>
    memref.store %8, %arg6[%c4_4] : memref<20xf32, #tpu.memory_space<smem>>
    %c5 = arith.constant 5 : index
    %10 = memref.load %arg0[%c5] : memref<20xf32, #tpu.memory_space<smem>>
    %c5_5 = arith.constant 5 : index
    %11 = memref.load %arg6[%c5_5] : memref<20xf32, #tpu.memory_space<smem>>
    memref.store %10, %arg6[%c5_5] : memref<20xf32, #tpu.memory_space<smem>>
    %c6 = arith.constant 6 : index
    %12 = memref.load %arg0[%c6] : memref<20xf32, #tpu.memory_space<smem>>
    %c6_6 = arith.constant 6 : index
    %13 = memref.load %arg6[%c6_6] : memref<20xf32, #tpu.memory_space<smem>>
    memref.store %12, %arg6[%c6_6] : memref<20xf32, #tpu.memory_space<smem>>
    %c7 = arith.constant 7 : index
    %14 = memref.load %arg0[%c7] : memref<20xf32, #tpu.memory_space<smem>>
    %c7_7 = arith.constant 7 : index
    %15 = memref.load %arg6[%c7_7] : memref<20xf32, #tpu.memory_space<smem>>
    memref.store %14, %arg6[%c7_7] : memref<20xf32, #tpu.memory_space<smem>>
    %c8 = arith.constant 8 : index
    %16 = memref.load %arg0[%c8] : memref<20xf32, #tpu.memory_space<smem>>
    %c8_8 = arith.constant 8 : index
    %17 = memref.load %arg6[%c8_8] : memref<20xf32, #tpu.memory_space<smem>>
    memref.store %16, %arg6[%c8_8] : memref<20xf32, #tpu.memory_space<smem>>
    %c9 = arith.constant 9 : index
    %18 = memref.load %arg0[%c9] : memref<20xf32, #tpu.memory_space<smem>>
    %c9_9 = arith.constant 9 : index
    %19 = memref.load %arg6[%c9_9] : memref<20xf32, #tpu.memory_space<smem>>
    memref.store %18, %arg6[%c9_9] : memref<20xf32, #tpu.memory_space<smem>>
    %c10 = arith.constant 10 : index
    %20 = memref.load %arg0[%c10] : memref<20xf32, #tpu.memory_space<smem>>
    %c10_10 = arith.constant 10 : index
    %21 = memref.load %arg6[%c10_10] : memref<20xf32, #tpu.memory_space<smem>>
    memref.store %20, %arg6[%c10_10] : memref<20xf32, #tpu.memory_space<smem>>
    %c11 = arith.constant 11 : index
    %22 = memref.load %arg0[%c11] : memref<20xf32, #tpu.memory_space<smem>>
    %c11_11 = arith.constant 11 : index
    %23 = memref.load %arg6[%c11_11] : memref<20xf32, #tpu.memory_space<smem>>
    memref.store %22, %arg6[%c11_11] : memref<20xf32, #tpu.memory_space<smem>>
    %c12 = arith.constant 12 : index
    %24 = memref.load %arg0[%c12] : memref<20xf32, #tpu.memory_space<smem>>
    %c12_12 = arith.constant 12 : index
    %25 = memref.load %arg6[%c12_12] : memref<20xf32, #tpu.memory_space<smem>>
    memref.store %24, %arg6[%c12_12] : memref<20xf32, #tpu.memory_space<smem>>
    %c13 = arith.constant 13 : index
    %26 = memref.load %arg0[%c13] : memref<20xf32, #tpu.memory_space<smem>>
    %c13_13 = arith.constant 13 : index
    %27 = memref.load %arg6[%c13_13] : memref<20xf32, #tpu.memory_space<smem>>
    memref.store %26, %arg6[%c13_13] : memref<20xf32, #tpu.memory_space<smem>>
    %c14 = arith.constant 14 : index
    %28 = memref.load %arg0[%c14] : memref<20xf32, #tpu.memory_space<smem>>
    %c14_14 = arith.constant 14 : index
    %29 = memref.load %arg6[%c14_14] : memref<20xf32, #tpu.memory_space<smem>>
    memref.store %28, %arg6[%c14_14] : memref<20xf32, #tpu.memory_space<smem>>
    %c15 = arith.constant 15 : index
    %30 = memref.load %arg0[%c15] : memref<20xf32, #tpu.memory_space<smem>>
    %c15_15 = arith.constant 15 : index
    %31 = memref.load %arg6[%c15_15] : memref<20xf32, #tpu.memory_space<smem>>
    memref.store %30, %arg6[%c15_15] : memref<20xf32, #tpu.memory_space<smem>>
    %c16 = arith.constant 16 : index
    %32 = memref.load %arg0[%c16] : memref<20xf32, #tpu.memory_space<smem>>
    %c16_16 = arith.constant 16 : index
    %33 = memref.load %arg6[%c16_16] : memref<20xf32, #tpu.memory_space<smem>>
    memref.store %32, %arg6[%c16_16] : memref<20xf32, #tpu.memory_space<smem>>
    %c17 = arith.constant 17 : index
    %34 = memref.load %arg0[%c17] : memref<20xf32, #tpu.memory_space<smem>>
    %c17_17 = arith.constant 17 : index
    %35 = memref.load %arg6[%c17_17] : memref<20xf32, #tpu.memory_space<smem>>
    memref.store %34, %arg6[%c17_17] : memref<20xf32, #tpu.memory_space<smem>>
    %c18 = arith.constant 18 : index
    %36 = memref.load %arg0[%c18] : memref<20xf32, #tpu.memory_space<smem>>
    %c18_18 = arith.constant 18 : index
    %37 = memref.load %arg6[%c18_18] : memref<20xf32, #tpu.memory_space<smem>>
    memref.store %36, %arg6[%c18_18] : memref<20xf32, #tpu.memory_space<smem>>
    %c19 = arith.constant 19 : index
    %38 = memref.load %arg0[%c19] : memref<20xf32, #tpu.memory_space<smem>>
    %c19_19 = arith.constant 19 : index
    %39 = memref.load %arg6[%c19_19] : memref<20xf32, #tpu.memory_space<smem>>
    memref.store %38, %arg6[%c19_19] : memref<20xf32, #tpu.memory_space<smem>>
    %c1_20 = arith.constant 1 : index
    %40 = memref.load %arg1[%c1_20] : memref<20xf32, #tpu.memory_space<smem>>
    %cst = arith.constant 1.000000e+00 : f32
    %41 = arith.divf %cst, %40 : f32
    %cst_21 = arith.constant 5.000000e-01 : f32
    %42 = arith.mulf %41, %cst_21 : f32
    %cst_22 = arith.constant 2.000000e+00 : f32
    %43 = arith.mulf %42, %cst_22 : f32
    %c2_23 = arith.constant 2 : index
    %44 = memref.load %arg1[%c2_23] : memref<20xf32, #tpu.memory_space<smem>>
    %c0_24 = arith.constant 0 : index
    %45 = memref.load %arg1[%c0_24] : memref<20xf32, #tpu.memory_space<smem>>
    %46 = arith.subf %44, %45 : f32
    %47 = arith.divf %43, %46 : f32
    %c0_i32 = arith.constant 0 : i32
    %c13_i32 = arith.constant 13 : i32
    %48 = arith.addi %c0_i32, %c13_i32 : i32
    %c1_i32 = arith.constant 1 : i32
    scf.for %arg10 = %c0_i32 to %48 step %c1_i32  : i32 {
      %49 = arith.index_cast %arg10 : i32 to index
      %50 = memref.load %arg5[%49] : memref<13xf32, #tpu.memory_space<smem>>
      %cst_26 = arith.constant 1.000000e+00 : f32
      %51 = arith.divf %cst_26, %50 : f32
      %c1_27 = arith.constant 1 : index
      %52 = memref.load %arg6[%c1_27] : memref<20xf32, #tpu.memory_space<smem>>
      %53 = arith.mulf %50, %47 : f32
      %54 = arith.addf %52, %53 : f32
      %c1_28 = arith.constant 1 : index
      %55 = memref.load %arg6[%c1_28] : memref<20xf32, #tpu.memory_space<smem>>
      memref.store %54, %arg6[%c1_28] : memref<20xf32, #tpu.memory_space<smem>>
      %c12_i32 = arith.constant 12 : i32
      %56 = arith.cmpi eq, %arg10, %c12_i32 : i32
      %57 = arith.extui %56 : i1 to i32
      %c0_i32_29 = arith.constant 0 : i32
      %58 = arith.cmpi ne, %57, %c0_i32_29 : i32
      scf.if %58 {
        %c0_227 = arith.constant 0 : index
        %450 = memref.load %arg6[%c0_227] : memref<20xf32, #tpu.memory_space<smem>>
        %c0_228 = arith.constant 0 : index
        %451 = memref.load %arg7[%c0_228] : memref<20xf32, #tpu.memory_space<smem>>
        memref.store %450, %arg7[%c0_228] : memref<20xf32, #tpu.memory_space<smem>>
        %c1_229 = arith.constant 1 : index
        %452 = memref.load %arg6[%c1_229] : memref<20xf32, #tpu.memory_space<smem>>
        %c1_230 = arith.constant 1 : index
        %453 = memref.load %arg7[%c1_230] : memref<20xf32, #tpu.memory_space<smem>>
        memref.store %452, %arg7[%c1_230] : memref<20xf32, #tpu.memory_space<smem>>
        %c2_231 = arith.constant 2 : index
        %454 = memref.load %arg6[%c2_231] : memref<20xf32, #tpu.memory_space<smem>>
        %c2_232 = arith.constant 2 : index
        %455 = memref.load %arg7[%c2_232] : memref<20xf32, #tpu.memory_space<smem>>
        memref.store %454, %arg7[%c2_232] : memref<20xf32, #tpu.memory_space<smem>>
        %c3_233 = arith.constant 3 : index
        %456 = memref.load %arg6[%c3_233] : memref<20xf32, #tpu.memory_space<smem>>
        %c3_234 = arith.constant 3 : index
        %457 = memref.load %arg7[%c3_234] : memref<20xf32, #tpu.memory_space<smem>>
        memref.store %456, %arg7[%c3_234] : memref<20xf32, #tpu.memory_space<smem>>
        %c4_235 = arith.constant 4 : index
        %458 = memref.load %arg6[%c4_235] : memref<20xf32, #tpu.memory_space<smem>>
        %c4_236 = arith.constant 4 : index
        %459 = memref.load %arg7[%c4_236] : memref<20xf32, #tpu.memory_space<smem>>
        memref.store %458, %arg7[%c4_236] : memref<20xf32, #tpu.memory_space<smem>>
        %c5_237 = arith.constant 5 : index
        %460 = memref.load %arg6[%c5_237] : memref<20xf32, #tpu.memory_space<smem>>
        %c5_238 = arith.constant 5 : index
        %461 = memref.load %arg7[%c5_238] : memref<20xf32, #tpu.memory_space<smem>>
        memref.store %460, %arg7[%c5_238] : memref<20xf32, #tpu.memory_space<smem>>
        %c6_239 = arith.constant 6 : index
        %462 = memref.load %arg6[%c6_239] : memref<20xf32, #tpu.memory_space<smem>>
        %c6_240 = arith.constant 6 : index
        %463 = memref.load %arg7[%c6_240] : memref<20xf32, #tpu.memory_space<smem>>
        memref.store %462, %arg7[%c6_240] : memref<20xf32, #tpu.memory_space<smem>>
        %c7_241 = arith.constant 7 : index
        %464 = memref.load %arg6[%c7_241] : memref<20xf32, #tpu.memory_space<smem>>
        %c7_242 = arith.constant 7 : index
        %465 = memref.load %arg7[%c7_242] : memref<20xf32, #tpu.memory_space<smem>>
        memref.store %464, %arg7[%c7_242] : memref<20xf32, #tpu.memory_space<smem>>
        %c8_243 = arith.constant 8 : index
        %466 = memref.load %arg6[%c8_243] : memref<20xf32, #tpu.memory_space<smem>>
        %c8_244 = arith.constant 8 : index
        %467 = memref.load %arg7[%c8_244] : memref<20xf32, #tpu.memory_space<smem>>
        memref.store %466, %arg7[%c8_244] : memref<20xf32, #tpu.memory_space<smem>>
        %c9_245 = arith.constant 9 : index
        %468 = memref.load %arg6[%c9_245] : memref<20xf32, #tpu.memory_space<smem>>
        %c9_246 = arith.constant 9 : index
        %469 = memref.load %arg7[%c9_246] : memref<20xf32, #tpu.memory_space<smem>>
        memref.store %468, %arg7[%c9_246] : memref<20xf32, #tpu.memory_space<smem>>
        %c10_247 = arith.constant 10 : index
        %470 = memref.load %arg6[%c10_247] : memref<20xf32, #tpu.memory_space<smem>>
        %c10_248 = arith.constant 10 : index
        %471 = memref.load %arg7[%c10_248] : memref<20xf32, #tpu.memory_space<smem>>
        memref.store %470, %arg7[%c10_248] : memref<20xf32, #tpu.memory_space<smem>>
        %c11_249 = arith.constant 11 : index
        %472 = memref.load %arg6[%c11_249] : memref<20xf32, #tpu.memory_space<smem>>
        %c11_250 = arith.constant 11 : index
        %473 = memref.load %arg7[%c11_250] : memref<20xf32, #tpu.memory_space<smem>>
        memref.store %472, %arg7[%c11_250] : memref<20xf32, #tpu.memory_space<smem>>
        %c12_251 = arith.constant 12 : index
        %474 = memref.load %arg6[%c12_251] : memref<20xf32, #tpu.memory_space<smem>>
        %c12_252 = arith.constant 12 : index
        %475 = memref.load %arg7[%c12_252] : memref<20xf32, #tpu.memory_space<smem>>
        memref.store %474, %arg7[%c12_252] : memref<20xf32, #tpu.memory_space<smem>>
        %c13_253 = arith.constant 13 : index
        %476 = memref.load %arg6[%c13_253] : memref<20xf32, #tpu.memory_space<smem>>
        %c13_254 = arith.constant 13 : index
        %477 = memref.load %arg7[%c13_254] : memref<20xf32, #tpu.memory_space<smem>>
        memref.store %476, %arg7[%c13_254] : memref<20xf32, #tpu.memory_space<smem>>
        %c14_255 = arith.constant 14 : index
        %478 = memref.load %arg6[%c14_255] : memref<20xf32, #tpu.memory_space<smem>>
        %c14_256 = arith.constant 14 : index
        %479 = memref.load %arg7[%c14_256] : memref<20xf32, #tpu.memory_space<smem>>
        memref.store %478, %arg7[%c14_256] : memref<20xf32, #tpu.memory_space<smem>>
        %c15_257 = arith.constant 15 : index
        %480 = memref.load %arg6[%c15_257] : memref<20xf32, #tpu.memory_space<smem>>
        %c15_258 = arith.constant 15 : index
        %481 = memref.load %arg7[%c15_258] : memref<20xf32, #tpu.memory_space<smem>>
        memref.store %480, %arg7[%c15_258] : memref<20xf32, #tpu.memory_space<smem>>
        %c16_259 = arith.constant 16 : index
        %482 = memref.load %arg6[%c16_259] : memref<20xf32, #tpu.memory_space<smem>>
        %c16_260 = arith.constant 16 : index
        %483 = memref.load %arg7[%c16_260] : memref<20xf32, #tpu.memory_space<smem>>
        memref.store %482, %arg7[%c16_260] : memref<20xf32, #tpu.memory_space<smem>>
        %c17_261 = arith.constant 17 : index
        %484 = memref.load %arg6[%c17_261] : memref<20xf32, #tpu.memory_space<smem>>
        %c17_262 = arith.constant 17 : index
        %485 = memref.load %arg7[%c17_262] : memref<20xf32, #tpu.memory_space<smem>>
        memref.store %484, %arg7[%c17_262] : memref<20xf32, #tpu.memory_space<smem>>
        %c18_263 = arith.constant 18 : index
        %486 = memref.load %arg6[%c18_263] : memref<20xf32, #tpu.memory_space<smem>>
        %c18_264 = arith.constant 18 : index
        %487 = memref.load %arg7[%c18_264] : memref<20xf32, #tpu.memory_space<smem>>
        memref.store %486, %arg7[%c18_264] : memref<20xf32, #tpu.memory_space<smem>>
        %c19_265 = arith.constant 19 : index
        %488 = memref.load %arg6[%c19_265] : memref<20xf32, #tpu.memory_space<smem>>
        %c19_266 = arith.constant 19 : index
        %489 = memref.load %arg7[%c19_266] : memref<20xf32, #tpu.memory_space<smem>>
        memref.store %488, %arg7[%c19_266] : memref<20xf32, #tpu.memory_space<smem>>
      } else {
      }
      %c0_30 = arith.constant 0 : index
      %59 = memref.load %arg3[%c0_30] : memref<20xf32, #tpu.memory_space<smem>>
      %60 = arith.addf %59, %51 : f32
      %cst_31 = arith.constant 1.000000e+00 : f32
      %61 = arith.divf %cst_31, %60 : f32
      %c0_32 = arith.constant 0 : index
      %62 = memref.load %arg4[%c0_32] : memref<20xf32, #tpu.memory_space<smem>>
      %63 = arith.mulf %62, %61 : f32
      %c0_33 = arith.constant 0 : index
      %64 = memref.load %arg6[%c0_33] : memref<20xf32, #tpu.memory_space<smem>>
      %65 = arith.mulf %64, %51 : f32
      %66 = arith.mulf %65, %61 : f32
      %c0_34 = arith.constant 0 : index
      %67 = memref.load %arg8[%c0_34] : memref<20xf32, #tpu.memory_space<smem>>
      memref.store %63, %arg8[%c0_34] : memref<20xf32, #tpu.memory_space<smem>>
      %c0_35 = arith.constant 0 : index
      %68 = memref.load %arg9[%c0_35] : memref<20xf32, #tpu.memory_space<smem>>
      memref.store %66, %arg9[%c0_35] : memref<20xf32, #tpu.memory_space<smem>>
      %c1_36 = arith.constant 1 : index
      %69 = memref.load %arg2[%c1_36] : memref<20xf32, #tpu.memory_space<smem>>
      %c1_37 = arith.constant 1 : index
      %70 = memref.load %arg3[%c1_37] : memref<20xf32, #tpu.memory_space<smem>>
      %71 = arith.addf %70, %51 : f32
      %72 = arith.mulf %69, %63 : f32
      %73 = arith.subf %71, %72 : f32
      %cst_38 = arith.constant 1.000000e+00 : f32
      %74 = arith.divf %cst_38, %73 : f32
      %c1_39 = arith.constant 1 : index
      %75 = memref.load %arg4[%c1_39] : memref<20xf32, #tpu.memory_space<smem>>
      %76 = arith.mulf %75, %74 : f32
      %c1_40 = arith.constant 1 : index
      %77 = memref.load %arg6[%c1_40] : memref<20xf32, #tpu.memory_space<smem>>
      %78 = arith.mulf %77, %51 : f32
      %79 = arith.mulf %69, %66 : f32
      %80 = arith.subf %78, %79 : f32
      %81 = arith.mulf %80, %74 : f32
      %c1_41 = arith.constant 1 : index
      %82 = memref.load %arg8[%c1_41] : memref<20xf32, #tpu.memory_space<smem>>
      memref.store %76, %arg8[%c1_41] : memref<20xf32, #tpu.memory_space<smem>>
      %c1_42 = arith.constant 1 : index
      %83 = memref.load %arg9[%c1_42] : memref<20xf32, #tpu.memory_space<smem>>
      memref.store %81, %arg9[%c1_42] : memref<20xf32, #tpu.memory_space<smem>>
      %c2_43 = arith.constant 2 : index
      %84 = memref.load %arg2[%c2_43] : memref<20xf32, #tpu.memory_space<smem>>
      %c2_44 = arith.constant 2 : index
      %85 = memref.load %arg3[%c2_44] : memref<20xf32, #tpu.memory_space<smem>>
      %86 = arith.addf %85, %51 : f32
      %87 = arith.mulf %84, %76 : f32
      %88 = arith.subf %86, %87 : f32
      %cst_45 = arith.constant 1.000000e+00 : f32
      %89 = arith.divf %cst_45, %88 : f32
      %c2_46 = arith.constant 2 : index
      %90 = memref.load %arg4[%c2_46] : memref<20xf32, #tpu.memory_space<smem>>
      %91 = arith.mulf %90, %89 : f32
      %c2_47 = arith.constant 2 : index
      %92 = memref.load %arg6[%c2_47] : memref<20xf32, #tpu.memory_space<smem>>
      %93 = arith.mulf %92, %51 : f32
      %94 = arith.mulf %84, %81 : f32
      %95 = arith.subf %93, %94 : f32
      %96 = arith.mulf %95, %89 : f32
      %c2_48 = arith.constant 2 : index
      %97 = memref.load %arg8[%c2_48] : memref<20xf32, #tpu.memory_space<smem>>
      memref.store %91, %arg8[%c2_48] : memref<20xf32, #tpu.memory_space<smem>>
      %c2_49 = arith.constant 2 : index
      %98 = memref.load %arg9[%c2_49] : memref<20xf32, #tpu.memory_space<smem>>
      memref.store %96, %arg9[%c2_49] : memref<20xf32, #tpu.memory_space<smem>>
      %c3_50 = arith.constant 3 : index
      %99 = memref.load %arg2[%c3_50] : memref<20xf32, #tpu.memory_space<smem>>
      %c3_51 = arith.constant 3 : index
      %100 = memref.load %arg3[%c3_51] : memref<20xf32, #tpu.memory_space<smem>>
      %101 = arith.addf %100, %51 : f32
      %102 = arith.mulf %99, %91 : f32
      %103 = arith.subf %101, %102 : f32
      %cst_52 = arith.constant 1.000000e+00 : f32
      %104 = arith.divf %cst_52, %103 : f32
      %c3_53 = arith.constant 3 : index
      %105 = memref.load %arg4[%c3_53] : memref<20xf32, #tpu.memory_space<smem>>
      %106 = arith.mulf %105, %104 : f32
      %c3_54 = arith.constant 3 : index
      %107 = memref.load %arg6[%c3_54] : memref<20xf32, #tpu.memory_space<smem>>
      %108 = arith.mulf %107, %51 : f32
      %109 = arith.mulf %99, %96 : f32
      %110 = arith.subf %108, %109 : f32
      %111 = arith.mulf %110, %104 : f32
      %c3_55 = arith.constant 3 : index
      %112 = memref.load %arg8[%c3_55] : memref<20xf32, #tpu.memory_space<smem>>
      memref.store %106, %arg8[%c3_55] : memref<20xf32, #tpu.memory_space<smem>>
      %c3_56 = arith.constant 3 : index
      %113 = memref.load %arg9[%c3_56] : memref<20xf32, #tpu.memory_space<smem>>
      memref.store %111, %arg9[%c3_56] : memref<20xf32, #tpu.memory_space<smem>>
      %c4_57 = arith.constant 4 : index
      %114 = memref.load %arg2[%c4_57] : memref<20xf32, #tpu.memory_space<smem>>
      %c4_58 = arith.constant 4 : index
      %115 = memref.load %arg3[%c4_58] : memref<20xf32, #tpu.memory_space<smem>>
      %116 = arith.addf %115, %51 : f32
      %117 = arith.mulf %114, %106 : f32
      %118 = arith.subf %116, %117 : f32
      %cst_59 = arith.constant 1.000000e+00 : f32
      %119 = arith.divf %cst_59, %118 : f32
      %c4_60 = arith.constant 4 : index
      %120 = memref.load %arg4[%c4_60] : memref<20xf32, #tpu.memory_space<smem>>
      %121 = arith.mulf %120, %119 : f32
      %c4_61 = arith.constant 4 : index
      %122 = memref.load %arg6[%c4_61] : memref<20xf32, #tpu.memory_space<smem>>
      %123 = arith.mulf %122, %51 : f32
      %124 = arith.mulf %114, %111 : f32
      %125 = arith.subf %123, %124 : f32
      %126 = arith.mulf %125, %119 : f32
      %c4_62 = arith.constant 4 : index
      %127 = memref.load %arg8[%c4_62] : memref<20xf32, #tpu.memory_space<smem>>
      memref.store %121, %arg8[%c4_62] : memref<20xf32, #tpu.memory_space<smem>>
      %c4_63 = arith.constant 4 : index
      %128 = memref.load %arg9[%c4_63] : memref<20xf32, #tpu.memory_space<smem>>
      memref.store %126, %arg9[%c4_63] : memref<20xf32, #tpu.memory_space<smem>>
      %c5_64 = arith.constant 5 : index
      %129 = memref.load %arg2[%c5_64] : memref<20xf32, #tpu.memory_space<smem>>
      %c5_65 = arith.constant 5 : index
      %130 = memref.load %arg3[%c5_65] : memref<20xf32, #tpu.memory_space<smem>>
      %131 = arith.addf %130, %51 : f32
      %132 = arith.mulf %129, %121 : f32
      %133 = arith.subf %131, %132 : f32
      %cst_66 = arith.constant 1.000000e+00 : f32
      %134 = arith.divf %cst_66, %133 : f32
      %c5_67 = arith.constant 5 : index
      %135 = memref.load %arg4[%c5_67] : memref<20xf32, #tpu.memory_space<smem>>
      %136 = arith.mulf %135, %134 : f32
      %c5_68 = arith.constant 5 : index
      %137 = memref.load %arg6[%c5_68] : memref<20xf32, #tpu.memory_space<smem>>
      %138 = arith.mulf %137, %51 : f32
      %139 = arith.mulf %129, %126 : f32
      %140 = arith.subf %138, %139 : f32
      %141 = arith.mulf %140, %134 : f32
      %c5_69 = arith.constant 5 : index
      %142 = memref.load %arg8[%c5_69] : memref<20xf32, #tpu.memory_space<smem>>
      memref.store %136, %arg8[%c5_69] : memref<20xf32, #tpu.memory_space<smem>>
      %c5_70 = arith.constant 5 : index
      %143 = memref.load %arg9[%c5_70] : memref<20xf32, #tpu.memory_space<smem>>
      memref.store %141, %arg9[%c5_70] : memref<20xf32, #tpu.memory_space<smem>>
      %c6_71 = arith.constant 6 : index
      %144 = memref.load %arg2[%c6_71] : memref<20xf32, #tpu.memory_space<smem>>
      %c6_72 = arith.constant 6 : index
      %145 = memref.load %arg3[%c6_72] : memref<20xf32, #tpu.memory_space<smem>>
      %146 = arith.addf %145, %51 : f32
      %147 = arith.mulf %144, %136 : f32
      %148 = arith.subf %146, %147 : f32
      %cst_73 = arith.constant 1.000000e+00 : f32
      %149 = arith.divf %cst_73, %148 : f32
      %c6_74 = arith.constant 6 : index
      %150 = memref.load %arg4[%c6_74] : memref<20xf32, #tpu.memory_space<smem>>
      %151 = arith.mulf %150, %149 : f32
      %c6_75 = arith.constant 6 : index
      %152 = memref.load %arg6[%c6_75] : memref<20xf32, #tpu.memory_space<smem>>
      %153 = arith.mulf %152, %51 : f32
      %154 = arith.mulf %144, %141 : f32
      %155 = arith.subf %153, %154 : f32
      %156 = arith.mulf %155, %149 : f32
      %c6_76 = arith.constant 6 : index
      %157 = memref.load %arg8[%c6_76] : memref<20xf32, #tpu.memory_space<smem>>
      memref.store %151, %arg8[%c6_76] : memref<20xf32, #tpu.memory_space<smem>>
      %c6_77 = arith.constant 6 : index
      %158 = memref.load %arg9[%c6_77] : memref<20xf32, #tpu.memory_space<smem>>
      memref.store %156, %arg9[%c6_77] : memref<20xf32, #tpu.memory_space<smem>>
      %c7_78 = arith.constant 7 : index
      %159 = memref.load %arg2[%c7_78] : memref<20xf32, #tpu.memory_space<smem>>
      %c7_79 = arith.constant 7 : index
      %160 = memref.load %arg3[%c7_79] : memref<20xf32, #tpu.memory_space<smem>>
      %161 = arith.addf %160, %51 : f32
      %162 = arith.mulf %159, %151 : f32
      %163 = arith.subf %161, %162 : f32
      %cst_80 = arith.constant 1.000000e+00 : f32
      %164 = arith.divf %cst_80, %163 : f32
      %c7_81 = arith.constant 7 : index
      %165 = memref.load %arg4[%c7_81] : memref<20xf32, #tpu.memory_space<smem>>
      %166 = arith.mulf %165, %164 : f32
      %c7_82 = arith.constant 7 : index
      %167 = memref.load %arg6[%c7_82] : memref<20xf32, #tpu.memory_space<smem>>
      %168 = arith.mulf %167, %51 : f32
      %169 = arith.mulf %159, %156 : f32
      %170 = arith.subf %168, %169 : f32
      %171 = arith.mulf %170, %164 : f32
      %c7_83 = arith.constant 7 : index
      %172 = memref.load %arg8[%c7_83] : memref<20xf32, #tpu.memory_space<smem>>
      memref.store %166, %arg8[%c7_83] : memref<20xf32, #tpu.memory_space<smem>>
      %c7_84 = arith.constant 7 : index
      %173 = memref.load %arg9[%c7_84] : memref<20xf32, #tpu.memory_space<smem>>
      memref.store %171, %arg9[%c7_84] : memref<20xf32, #tpu.memory_space<smem>>
      %c8_85 = arith.constant 8 : index
      %174 = memref.load %arg2[%c8_85] : memref<20xf32, #tpu.memory_space<smem>>
      %c8_86 = arith.constant 8 : index
      %175 = memref.load %arg3[%c8_86] : memref<20xf32, #tpu.memory_space<smem>>
      %176 = arith.addf %175, %51 : f32
      %177 = arith.mulf %174, %166 : f32
      %178 = arith.subf %176, %177 : f32
      %cst_87 = arith.constant 1.000000e+00 : f32
      %179 = arith.divf %cst_87, %178 : f32
      %c8_88 = arith.constant 8 : index
      %180 = memref.load %arg4[%c8_88] : memref<20xf32, #tpu.memory_space<smem>>
      %181 = arith.mulf %180, %179 : f32
      %c8_89 = arith.constant 8 : index
      %182 = memref.load %arg6[%c8_89] : memref<20xf32, #tpu.memory_space<smem>>
      %183 = arith.mulf %182, %51 : f32
      %184 = arith.mulf %174, %171 : f32
      %185 = arith.subf %183, %184 : f32
      %186 = arith.mulf %185, %179 : f32
      %c8_90 = arith.constant 8 : index
      %187 = memref.load %arg8[%c8_90] : memref<20xf32, #tpu.memory_space<smem>>
      memref.store %181, %arg8[%c8_90] : memref<20xf32, #tpu.memory_space<smem>>
      %c8_91 = arith.constant 8 : index
      %188 = memref.load %arg9[%c8_91] : memref<20xf32, #tpu.memory_space<smem>>
      memref.store %186, %arg9[%c8_91] : memref<20xf32, #tpu.memory_space<smem>>
      %c9_92 = arith.constant 9 : index
      %189 = memref.load %arg2[%c9_92] : memref<20xf32, #tpu.memory_space<smem>>
      %c9_93 = arith.constant 9 : index
      %190 = memref.load %arg3[%c9_93] : memref<20xf32, #tpu.memory_space<smem>>
      %191 = arith.addf %190, %51 : f32
      %192 = arith.mulf %189, %181 : f32
      %193 = arith.subf %191, %192 : f32
      %cst_94 = arith.constant 1.000000e+00 : f32
      %194 = arith.divf %cst_94, %193 : f32
      %c9_95 = arith.constant 9 : index
      %195 = memref.load %arg4[%c9_95] : memref<20xf32, #tpu.memory_space<smem>>
      %196 = arith.mulf %195, %194 : f32
      %c9_96 = arith.constant 9 : index
      %197 = memref.load %arg6[%c9_96] : memref<20xf32, #tpu.memory_space<smem>>
      %198 = arith.mulf %197, %51 : f32
      %199 = arith.mulf %189, %186 : f32
      %200 = arith.subf %198, %199 : f32
      %201 = arith.mulf %200, %194 : f32
      %c9_97 = arith.constant 9 : index
      %202 = memref.load %arg8[%c9_97] : memref<20xf32, #tpu.memory_space<smem>>
      memref.store %196, %arg8[%c9_97] : memref<20xf32, #tpu.memory_space<smem>>
      %c9_98 = arith.constant 9 : index
      %203 = memref.load %arg9[%c9_98] : memref<20xf32, #tpu.memory_space<smem>>
      memref.store %201, %arg9[%c9_98] : memref<20xf32, #tpu.memory_space<smem>>
      %c10_99 = arith.constant 10 : index
      %204 = memref.load %arg2[%c10_99] : memref<20xf32, #tpu.memory_space<smem>>
      %c10_100 = arith.constant 10 : index
      %205 = memref.load %arg3[%c10_100] : memref<20xf32, #tpu.memory_space<smem>>
      %206 = arith.addf %205, %51 : f32
      %207 = arith.mulf %204, %196 : f32
      %208 = arith.subf %206, %207 : f32
      %cst_101 = arith.constant 1.000000e+00 : f32
      %209 = arith.divf %cst_101, %208 : f32
      %c10_102 = arith.constant 10 : index
      %210 = memref.load %arg4[%c10_102] : memref<20xf32, #tpu.memory_space<smem>>
      %211 = arith.mulf %210, %209 : f32
      %c10_103 = arith.constant 10 : index
      %212 = memref.load %arg6[%c10_103] : memref<20xf32, #tpu.memory_space<smem>>
      %213 = arith.mulf %212, %51 : f32
      %214 = arith.mulf %204, %201 : f32
      %215 = arith.subf %213, %214 : f32
      %216 = arith.mulf %215, %209 : f32
      %c10_104 = arith.constant 10 : index
      %217 = memref.load %arg8[%c10_104] : memref<20xf32, #tpu.memory_space<smem>>
      memref.store %211, %arg8[%c10_104] : memref<20xf32, #tpu.memory_space<smem>>
      %c10_105 = arith.constant 10 : index
      %218 = memref.load %arg9[%c10_105] : memref<20xf32, #tpu.memory_space<smem>>
      memref.store %216, %arg9[%c10_105] : memref<20xf32, #tpu.memory_space<smem>>
      %c11_106 = arith.constant 11 : index
      %219 = memref.load %arg2[%c11_106] : memref<20xf32, #tpu.memory_space<smem>>
      %c11_107 = arith.constant 11 : index
      %220 = memref.load %arg3[%c11_107] : memref<20xf32, #tpu.memory_space<smem>>
      %221 = arith.addf %220, %51 : f32
      %222 = arith.mulf %219, %211 : f32
      %223 = arith.subf %221, %222 : f32
      %cst_108 = arith.constant 1.000000e+00 : f32
      %224 = arith.divf %cst_108, %223 : f32
      %c11_109 = arith.constant 11 : index
      %225 = memref.load %arg4[%c11_109] : memref<20xf32, #tpu.memory_space<smem>>
      %226 = arith.mulf %225, %224 : f32
      %c11_110 = arith.constant 11 : index
      %227 = memref.load %arg6[%c11_110] : memref<20xf32, #tpu.memory_space<smem>>
      %228 = arith.mulf %227, %51 : f32
      %229 = arith.mulf %219, %216 : f32
      %230 = arith.subf %228, %229 : f32
      %231 = arith.mulf %230, %224 : f32
      %c11_111 = arith.constant 11 : index
      %232 = memref.load %arg8[%c11_111] : memref<20xf32, #tpu.memory_space<smem>>
      memref.store %226, %arg8[%c11_111] : memref<20xf32, #tpu.memory_space<smem>>
      %c11_112 = arith.constant 11 : index
      %233 = memref.load %arg9[%c11_112] : memref<20xf32, #tpu.memory_space<smem>>
      memref.store %231, %arg9[%c11_112] : memref<20xf32, #tpu.memory_space<smem>>
      %c12_113 = arith.constant 12 : index
      %234 = memref.load %arg2[%c12_113] : memref<20xf32, #tpu.memory_space<smem>>
      %c12_114 = arith.constant 12 : index
      %235 = memref.load %arg3[%c12_114] : memref<20xf32, #tpu.memory_space<smem>>
      %236 = arith.addf %235, %51 : f32
      %237 = arith.mulf %234, %226 : f32
      %238 = arith.subf %236, %237 : f32
      %cst_115 = arith.constant 1.000000e+00 : f32
      %239 = arith.divf %cst_115, %238 : f32
      %c12_116 = arith.constant 12 : index
      %240 = memref.load %arg4[%c12_116] : memref<20xf32, #tpu.memory_space<smem>>
      %241 = arith.mulf %240, %239 : f32
      %c12_117 = arith.constant 12 : index
      %242 = memref.load %arg6[%c12_117] : memref<20xf32, #tpu.memory_space<smem>>
      %243 = arith.mulf %242, %51 : f32
      %244 = arith.mulf %234, %231 : f32
      %245 = arith.subf %243, %244 : f32
      %246 = arith.mulf %245, %239 : f32
      %c12_118 = arith.constant 12 : index
      %247 = memref.load %arg8[%c12_118] : memref<20xf32, #tpu.memory_space<smem>>
      memref.store %241, %arg8[%c12_118] : memref<20xf32, #tpu.memory_space<smem>>
      %c12_119 = arith.constant 12 : index
      %248 = memref.load %arg9[%c12_119] : memref<20xf32, #tpu.memory_space<smem>>
      memref.store %246, %arg9[%c12_119] : memref<20xf32, #tpu.memory_space<smem>>
      %c13_120 = arith.constant 13 : index
      %249 = memref.load %arg2[%c13_120] : memref<20xf32, #tpu.memory_space<smem>>
      %c13_121 = arith.constant 13 : index
      %250 = memref.load %arg3[%c13_121] : memref<20xf32, #tpu.memory_space<smem>>
      %251 = arith.addf %250, %51 : f32
      %252 = arith.mulf %249, %241 : f32
      %253 = arith.subf %251, %252 : f32
      %cst_122 = arith.constant 1.000000e+00 : f32
      %254 = arith.divf %cst_122, %253 : f32
      %c13_123 = arith.constant 13 : index
      %255 = memref.load %arg4[%c13_123] : memref<20xf32, #tpu.memory_space<smem>>
      %256 = arith.mulf %255, %254 : f32
      %c13_124 = arith.constant 13 : index
      %257 = memref.load %arg6[%c13_124] : memref<20xf32, #tpu.memory_space<smem>>
      %258 = arith.mulf %257, %51 : f32
      %259 = arith.mulf %249, %246 : f32
      %260 = arith.subf %258, %259 : f32
      %261 = arith.mulf %260, %254 : f32
      %c13_125 = arith.constant 13 : index
      %262 = memref.load %arg8[%c13_125] : memref<20xf32, #tpu.memory_space<smem>>
      memref.store %256, %arg8[%c13_125] : memref<20xf32, #tpu.memory_space<smem>>
      %c13_126 = arith.constant 13 : index
      %263 = memref.load %arg9[%c13_126] : memref<20xf32, #tpu.memory_space<smem>>
      memref.store %261, %arg9[%c13_126] : memref<20xf32, #tpu.memory_space<smem>>
      %c14_127 = arith.constant 14 : index
      %264 = memref.load %arg2[%c14_127] : memref<20xf32, #tpu.memory_space<smem>>
      %c14_128 = arith.constant 14 : index
      %265 = memref.load %arg3[%c14_128] : memref<20xf32, #tpu.memory_space<smem>>
      %266 = arith.addf %265, %51 : f32
      %267 = arith.mulf %264, %256 : f32
      %268 = arith.subf %266, %267 : f32
      %cst_129 = arith.constant 1.000000e+00 : f32
      %269 = arith.divf %cst_129, %268 : f32
      %c14_130 = arith.constant 14 : index
      %270 = memref.load %arg4[%c14_130] : memref<20xf32, #tpu.memory_space<smem>>
      %271 = arith.mulf %270, %269 : f32
      %c14_131 = arith.constant 14 : index
      %272 = memref.load %arg6[%c14_131] : memref<20xf32, #tpu.memory_space<smem>>
      %273 = arith.mulf %272, %51 : f32
      %274 = arith.mulf %264, %261 : f32
      %275 = arith.subf %273, %274 : f32
      %276 = arith.mulf %275, %269 : f32
      %c14_132 = arith.constant 14 : index
      %277 = memref.load %arg8[%c14_132] : memref<20xf32, #tpu.memory_space<smem>>
      memref.store %271, %arg8[%c14_132] : memref<20xf32, #tpu.memory_space<smem>>
      %c14_133 = arith.constant 14 : index
      %278 = memref.load %arg9[%c14_133] : memref<20xf32, #tpu.memory_space<smem>>
      memref.store %276, %arg9[%c14_133] : memref<20xf32, #tpu.memory_space<smem>>
      %c15_134 = arith.constant 15 : index
      %279 = memref.load %arg2[%c15_134] : memref<20xf32, #tpu.memory_space<smem>>
      %c15_135 = arith.constant 15 : index
      %280 = memref.load %arg3[%c15_135] : memref<20xf32, #tpu.memory_space<smem>>
      %281 = arith.addf %280, %51 : f32
      %282 = arith.mulf %279, %271 : f32
      %283 = arith.subf %281, %282 : f32
      %cst_136 = arith.constant 1.000000e+00 : f32
      %284 = arith.divf %cst_136, %283 : f32
      %c15_137 = arith.constant 15 : index
      %285 = memref.load %arg4[%c15_137] : memref<20xf32, #tpu.memory_space<smem>>
      %286 = arith.mulf %285, %284 : f32
      %c15_138 = arith.constant 15 : index
      %287 = memref.load %arg6[%c15_138] : memref<20xf32, #tpu.memory_space<smem>>
      %288 = arith.mulf %287, %51 : f32
      %289 = arith.mulf %279, %276 : f32
      %290 = arith.subf %288, %289 : f32
      %291 = arith.mulf %290, %284 : f32
      %c15_139 = arith.constant 15 : index
      %292 = memref.load %arg8[%c15_139] : memref<20xf32, #tpu.memory_space<smem>>
      memref.store %286, %arg8[%c15_139] : memref<20xf32, #tpu.memory_space<smem>>
      %c15_140 = arith.constant 15 : index
      %293 = memref.load %arg9[%c15_140] : memref<20xf32, #tpu.memory_space<smem>>
      memref.store %291, %arg9[%c15_140] : memref<20xf32, #tpu.memory_space<smem>>
      %c16_141 = arith.constant 16 : index
      %294 = memref.load %arg2[%c16_141] : memref<20xf32, #tpu.memory_space<smem>>
      %c16_142 = arith.constant 16 : index
      %295 = memref.load %arg3[%c16_142] : memref<20xf32, #tpu.memory_space<smem>>
      %296 = arith.addf %295, %51 : f32
      %297 = arith.mulf %294, %286 : f32
      %298 = arith.subf %296, %297 : f32
      %cst_143 = arith.constant 1.000000e+00 : f32
      %299 = arith.divf %cst_143, %298 : f32
      %c16_144 = arith.constant 16 : index
      %300 = memref.load %arg4[%c16_144] : memref<20xf32, #tpu.memory_space<smem>>
      %301 = arith.mulf %300, %299 : f32
      %c16_145 = arith.constant 16 : index
      %302 = memref.load %arg6[%c16_145] : memref<20xf32, #tpu.memory_space<smem>>
      %303 = arith.mulf %302, %51 : f32
      %304 = arith.mulf %294, %291 : f32
      %305 = arith.subf %303, %304 : f32
      %306 = arith.mulf %305, %299 : f32
      %c16_146 = arith.constant 16 : index
      %307 = memref.load %arg8[%c16_146] : memref<20xf32, #tpu.memory_space<smem>>
      memref.store %301, %arg8[%c16_146] : memref<20xf32, #tpu.memory_space<smem>>
      %c16_147 = arith.constant 16 : index
      %308 = memref.load %arg9[%c16_147] : memref<20xf32, #tpu.memory_space<smem>>
      memref.store %306, %arg9[%c16_147] : memref<20xf32, #tpu.memory_space<smem>>
      %c17_148 = arith.constant 17 : index
      %309 = memref.load %arg2[%c17_148] : memref<20xf32, #tpu.memory_space<smem>>
      %c17_149 = arith.constant 17 : index
      %310 = memref.load %arg3[%c17_149] : memref<20xf32, #tpu.memory_space<smem>>
      %311 = arith.addf %310, %51 : f32
      %312 = arith.mulf %309, %301 : f32
      %313 = arith.subf %311, %312 : f32
      %cst_150 = arith.constant 1.000000e+00 : f32
      %314 = arith.divf %cst_150, %313 : f32
      %c17_151 = arith.constant 17 : index
      %315 = memref.load %arg4[%c17_151] : memref<20xf32, #tpu.memory_space<smem>>
      %316 = arith.mulf %315, %314 : f32
      %c17_152 = arith.constant 17 : index
      %317 = memref.load %arg6[%c17_152] : memref<20xf32, #tpu.memory_space<smem>>
      %318 = arith.mulf %317, %51 : f32
      %319 = arith.mulf %309, %306 : f32
      %320 = arith.subf %318, %319 : f32
      %321 = arith.mulf %320, %314 : f32
      %c17_153 = arith.constant 17 : index
      %322 = memref.load %arg8[%c17_153] : memref<20xf32, #tpu.memory_space<smem>>
      memref.store %316, %arg8[%c17_153] : memref<20xf32, #tpu.memory_space<smem>>
      %c17_154 = arith.constant 17 : index
      %323 = memref.load %arg9[%c17_154] : memref<20xf32, #tpu.memory_space<smem>>
      memref.store %321, %arg9[%c17_154] : memref<20xf32, #tpu.memory_space<smem>>
      %c18_155 = arith.constant 18 : index
      %324 = memref.load %arg2[%c18_155] : memref<20xf32, #tpu.memory_space<smem>>
      %c18_156 = arith.constant 18 : index
      %325 = memref.load %arg3[%c18_156] : memref<20xf32, #tpu.memory_space<smem>>
      %326 = arith.addf %325, %51 : f32
      %327 = arith.mulf %324, %316 : f32
      %328 = arith.subf %326, %327 : f32
      %cst_157 = arith.constant 1.000000e+00 : f32
      %329 = arith.divf %cst_157, %328 : f32
      %c18_158 = arith.constant 18 : index
      %330 = memref.load %arg4[%c18_158] : memref<20xf32, #tpu.memory_space<smem>>
      %331 = arith.mulf %330, %329 : f32
      %c18_159 = arith.constant 18 : index
      %332 = memref.load %arg6[%c18_159] : memref<20xf32, #tpu.memory_space<smem>>
      %333 = arith.mulf %332, %51 : f32
      %334 = arith.mulf %324, %321 : f32
      %335 = arith.subf %333, %334 : f32
      %336 = arith.mulf %335, %329 : f32
      %c18_160 = arith.constant 18 : index
      %337 = memref.load %arg8[%c18_160] : memref<20xf32, #tpu.memory_space<smem>>
      memref.store %331, %arg8[%c18_160] : memref<20xf32, #tpu.memory_space<smem>>
      %c18_161 = arith.constant 18 : index
      %338 = memref.load %arg9[%c18_161] : memref<20xf32, #tpu.memory_space<smem>>
      memref.store %336, %arg9[%c18_161] : memref<20xf32, #tpu.memory_space<smem>>
      %c19_162 = arith.constant 19 : index
      %339 = memref.load %arg2[%c19_162] : memref<20xf32, #tpu.memory_space<smem>>
      %c19_163 = arith.constant 19 : index
      %340 = memref.load %arg3[%c19_163] : memref<20xf32, #tpu.memory_space<smem>>
      %341 = arith.addf %340, %51 : f32
      %342 = arith.mulf %339, %331 : f32
      %343 = arith.subf %341, %342 : f32
      %cst_164 = arith.constant 1.000000e+00 : f32
      %344 = arith.divf %cst_164, %343 : f32
      %c19_165 = arith.constant 19 : index
      %345 = memref.load %arg4[%c19_165] : memref<20xf32, #tpu.memory_space<smem>>
      %346 = arith.mulf %345, %344 : f32
      %c19_166 = arith.constant 19 : index
      %347 = memref.load %arg6[%c19_166] : memref<20xf32, #tpu.memory_space<smem>>
      %348 = arith.mulf %347, %51 : f32
      %349 = arith.mulf %339, %336 : f32
      %350 = arith.subf %348, %349 : f32
      %351 = arith.mulf %350, %344 : f32
      %c19_167 = arith.constant 19 : index
      %352 = memref.load %arg8[%c19_167] : memref<20xf32, #tpu.memory_space<smem>>
      memref.store %346, %arg8[%c19_167] : memref<20xf32, #tpu.memory_space<smem>>
      %c19_168 = arith.constant 19 : index
      %353 = memref.load %arg9[%c19_168] : memref<20xf32, #tpu.memory_space<smem>>
      memref.store %351, %arg9[%c19_168] : memref<20xf32, #tpu.memory_space<smem>>
      %c19_169 = arith.constant 19 : index
      %354 = memref.load %arg6[%c19_169] : memref<20xf32, #tpu.memory_space<smem>>
      memref.store %351, %arg6[%c19_169] : memref<20xf32, #tpu.memory_space<smem>>
      %c18_170 = arith.constant 18 : index
      %355 = memref.load %arg9[%c18_170] : memref<20xf32, #tpu.memory_space<smem>>
      %c18_171 = arith.constant 18 : index
      %356 = memref.load %arg8[%c18_171] : memref<20xf32, #tpu.memory_space<smem>>
      %357 = arith.mulf %356, %351 : f32
      %358 = arith.subf %355, %357 : f32
      %c18_172 = arith.constant 18 : index
      %359 = memref.load %arg6[%c18_172] : memref<20xf32, #tpu.memory_space<smem>>
      memref.store %358, %arg6[%c18_172] : memref<20xf32, #tpu.memory_space<smem>>
      %c17_173 = arith.constant 17 : index
      %360 = memref.load %arg9[%c17_173] : memref<20xf32, #tpu.memory_space<smem>>
      %c17_174 = arith.constant 17 : index
      %361 = memref.load %arg8[%c17_174] : memref<20xf32, #tpu.memory_space<smem>>
      %362 = arith.mulf %361, %358 : f32
      %363 = arith.subf %360, %362 : f32
      %c17_175 = arith.constant 17 : index
      %364 = memref.load %arg6[%c17_175] : memref<20xf32, #tpu.memory_space<smem>>
      memref.store %363, %arg6[%c17_175] : memref<20xf32, #tpu.memory_space<smem>>
      %c16_176 = arith.constant 16 : index
      %365 = memref.load %arg9[%c16_176] : memref<20xf32, #tpu.memory_space<smem>>
      %c16_177 = arith.constant 16 : index
      %366 = memref.load %arg8[%c16_177] : memref<20xf32, #tpu.memory_space<smem>>
      %367 = arith.mulf %366, %363 : f32
      %368 = arith.subf %365, %367 : f32
      %c16_178 = arith.constant 16 : index
      %369 = memref.load %arg6[%c16_178] : memref<20xf32, #tpu.memory_space<smem>>
      memref.store %368, %arg6[%c16_178] : memref<20xf32, #tpu.memory_space<smem>>
      %c15_179 = arith.constant 15 : index
      %370 = memref.load %arg9[%c15_179] : memref<20xf32, #tpu.memory_space<smem>>
      %c15_180 = arith.constant 15 : index
      %371 = memref.load %arg8[%c15_180] : memref<20xf32, #tpu.memory_space<smem>>
      %372 = arith.mulf %371, %368 : f32
      %373 = arith.subf %370, %372 : f32
      %c15_181 = arith.constant 15 : index
      %374 = memref.load %arg6[%c15_181] : memref<20xf32, #tpu.memory_space<smem>>
      memref.store %373, %arg6[%c15_181] : memref<20xf32, #tpu.memory_space<smem>>
      %c14_182 = arith.constant 14 : index
      %375 = memref.load %arg9[%c14_182] : memref<20xf32, #tpu.memory_space<smem>>
      %c14_183 = arith.constant 14 : index
      %376 = memref.load %arg8[%c14_183] : memref<20xf32, #tpu.memory_space<smem>>
      %377 = arith.mulf %376, %373 : f32
      %378 = arith.subf %375, %377 : f32
      %c14_184 = arith.constant 14 : index
      %379 = memref.load %arg6[%c14_184] : memref<20xf32, #tpu.memory_space<smem>>
      memref.store %378, %arg6[%c14_184] : memref<20xf32, #tpu.memory_space<smem>>
      %c13_185 = arith.constant 13 : index
      %380 = memref.load %arg9[%c13_185] : memref<20xf32, #tpu.memory_space<smem>>
      %c13_186 = arith.constant 13 : index
      %381 = memref.load %arg8[%c13_186] : memref<20xf32, #tpu.memory_space<smem>>
      %382 = arith.mulf %381, %378 : f32
      %383 = arith.subf %380, %382 : f32
      %c13_187 = arith.constant 13 : index
      %384 = memref.load %arg6[%c13_187] : memref<20xf32, #tpu.memory_space<smem>>
      memref.store %383, %arg6[%c13_187] : memref<20xf32, #tpu.memory_space<smem>>
      %c12_188 = arith.constant 12 : index
      %385 = memref.load %arg9[%c12_188] : memref<20xf32, #tpu.memory_space<smem>>
      %c12_189 = arith.constant 12 : index
      %386 = memref.load %arg8[%c12_189] : memref<20xf32, #tpu.memory_space<smem>>
      %387 = arith.mulf %386, %383 : f32
      %388 = arith.subf %385, %387 : f32
      %c12_190 = arith.constant 12 : index
      %389 = memref.load %arg6[%c12_190] : memref<20xf32, #tpu.memory_space<smem>>
      memref.store %388, %arg6[%c12_190] : memref<20xf32, #tpu.memory_space<smem>>
      %c11_191 = arith.constant 11 : index
      %390 = memref.load %arg9[%c11_191] : memref<20xf32, #tpu.memory_space<smem>>
      %c11_192 = arith.constant 11 : index
      %391 = memref.load %arg8[%c11_192] : memref<20xf32, #tpu.memory_space<smem>>
      %392 = arith.mulf %391, %388 : f32
      %393 = arith.subf %390, %392 : f32
      %c11_193 = arith.constant 11 : index
      %394 = memref.load %arg6[%c11_193] : memref<20xf32, #tpu.memory_space<smem>>
      memref.store %393, %arg6[%c11_193] : memref<20xf32, #tpu.memory_space<smem>>
      %c10_194 = arith.constant 10 : index
      %395 = memref.load %arg9[%c10_194] : memref<20xf32, #tpu.memory_space<smem>>
      %c10_195 = arith.constant 10 : index
      %396 = memref.load %arg8[%c10_195] : memref<20xf32, #tpu.memory_space<smem>>
      %397 = arith.mulf %396, %393 : f32
      %398 = arith.subf %395, %397 : f32
      %c10_196 = arith.constant 10 : index
      %399 = memref.load %arg6[%c10_196] : memref<20xf32, #tpu.memory_space<smem>>
      memref.store %398, %arg6[%c10_196] : memref<20xf32, #tpu.memory_space<smem>>
      %c9_197 = arith.constant 9 : index
      %400 = memref.load %arg9[%c9_197] : memref<20xf32, #tpu.memory_space<smem>>
      %c9_198 = arith.constant 9 : index
      %401 = memref.load %arg8[%c9_198] : memref<20xf32, #tpu.memory_space<smem>>
      %402 = arith.mulf %401, %398 : f32
      %403 = arith.subf %400, %402 : f32
      %c9_199 = arith.constant 9 : index
      %404 = memref.load %arg6[%c9_199] : memref<20xf32, #tpu.memory_space<smem>>
      memref.store %403, %arg6[%c9_199] : memref<20xf32, #tpu.memory_space<smem>>
      %c8_200 = arith.constant 8 : index
      %405 = memref.load %arg9[%c8_200] : memref<20xf32, #tpu.memory_space<smem>>
      %c8_201 = arith.constant 8 : index
      %406 = memref.load %arg8[%c8_201] : memref<20xf32, #tpu.memory_space<smem>>
      %407 = arith.mulf %406, %403 : f32
      %408 = arith.subf %405, %407 : f32
      %c8_202 = arith.constant 8 : index
      %409 = memref.load %arg6[%c8_202] : memref<20xf32, #tpu.memory_space<smem>>
      memref.store %408, %arg6[%c8_202] : memref<20xf32, #tpu.memory_space<smem>>
      %c7_203 = arith.constant 7 : index
      %410 = memref.load %arg9[%c7_203] : memref<20xf32, #tpu.memory_space<smem>>
      %c7_204 = arith.constant 7 : index
      %411 = memref.load %arg8[%c7_204] : memref<20xf32, #tpu.memory_space<smem>>
      %412 = arith.mulf %411, %408 : f32
      %413 = arith.subf %410, %412 : f32
      %c7_205 = arith.constant 7 : index
      %414 = memref.load %arg6[%c7_205] : memref<20xf32, #tpu.memory_space<smem>>
      memref.store %413, %arg6[%c7_205] : memref<20xf32, #tpu.memory_space<smem>>
      %c6_206 = arith.constant 6 : index
      %415 = memref.load %arg9[%c6_206] : memref<20xf32, #tpu.memory_space<smem>>
      %c6_207 = arith.constant 6 : index
      %416 = memref.load %arg8[%c6_207] : memref<20xf32, #tpu.memory_space<smem>>
      %417 = arith.mulf %416, %413 : f32
      %418 = arith.subf %415, %417 : f32
      %c6_208 = arith.constant 6 : index
      %419 = memref.load %arg6[%c6_208] : memref<20xf32, #tpu.memory_space<smem>>
      memref.store %418, %arg6[%c6_208] : memref<20xf32, #tpu.memory_space<smem>>
      %c5_209 = arith.constant 5 : index
      %420 = memref.load %arg9[%c5_209] : memref<20xf32, #tpu.memory_space<smem>>
      %c5_210 = arith.constant 5 : index
      %421 = memref.load %arg8[%c5_210] : memref<20xf32, #tpu.memory_space<smem>>
      %422 = arith.mulf %421, %418 : f32
      %423 = arith.subf %420, %422 : f32
      %c5_211 = arith.constant 5 : index
      %424 = memref.load %arg6[%c5_211] : memref<20xf32, #tpu.memory_space<smem>>
      memref.store %423, %arg6[%c5_211] : memref<20xf32, #tpu.memory_space<smem>>
      %c4_212 = arith.constant 4 : index
      %425 = memref.load %arg9[%c4_212] : memref<20xf32, #tpu.memory_space<smem>>
      %c4_213 = arith.constant 4 : index
      %426 = memref.load %arg8[%c4_213] : memref<20xf32, #tpu.memory_space<smem>>
      %427 = arith.mulf %426, %423 : f32
      %428 = arith.subf %425, %427 : f32
      %c4_214 = arith.constant 4 : index
      %429 = memref.load %arg6[%c4_214] : memref<20xf32, #tpu.memory_space<smem>>
      memref.store %428, %arg6[%c4_214] : memref<20xf32, #tpu.memory_space<smem>>
      %c3_215 = arith.constant 3 : index
      %430 = memref.load %arg9[%c3_215] : memref<20xf32, #tpu.memory_space<smem>>
      %c3_216 = arith.constant 3 : index
      %431 = memref.load %arg8[%c3_216] : memref<20xf32, #tpu.memory_space<smem>>
      %432 = arith.mulf %431, %428 : f32
      %433 = arith.subf %430, %432 : f32
      %c3_217 = arith.constant 3 : index
      %434 = memref.load %arg6[%c3_217] : memref<20xf32, #tpu.memory_space<smem>>
      memref.store %433, %arg6[%c3_217] : memref<20xf32, #tpu.memory_space<smem>>
      %c2_218 = arith.constant 2 : index
      %435 = memref.load %arg9[%c2_218] : memref<20xf32, #tpu.memory_space<smem>>
      %c2_219 = arith.constant 2 : index
      %436 = memref.load %arg8[%c2_219] : memref<20xf32, #tpu.memory_space<smem>>
      %437 = arith.mulf %436, %433 : f32
      %438 = arith.subf %435, %437 : f32
      %c2_220 = arith.constant 2 : index
      %439 = memref.load %arg6[%c2_220] : memref<20xf32, #tpu.memory_space<smem>>
      memref.store %438, %arg6[%c2_220] : memref<20xf32, #tpu.memory_space<smem>>
      %c1_221 = arith.constant 1 : index
      %440 = memref.load %arg9[%c1_221] : memref<20xf32, #tpu.memory_space<smem>>
      %c1_222 = arith.constant 1 : index
      %441 = memref.load %arg8[%c1_222] : memref<20xf32, #tpu.memory_space<smem>>
      %442 = arith.mulf %441, %438 : f32
      %443 = arith.subf %440, %442 : f32
      %c1_223 = arith.constant 1 : index
      %444 = memref.load %arg6[%c1_223] : memref<20xf32, #tpu.memory_space<smem>>
      memref.store %443, %arg6[%c1_223] : memref<20xf32, #tpu.memory_space<smem>>
      %c0_224 = arith.constant 0 : index
      %445 = memref.load %arg9[%c0_224] : memref<20xf32, #tpu.memory_space<smem>>
      %c0_225 = arith.constant 0 : index
      %446 = memref.load %arg8[%c0_225] : memref<20xf32, #tpu.memory_space<smem>>
      %447 = arith.mulf %446, %443 : f32
      %448 = arith.subf %445, %447 : f32
      %c0_226 = arith.constant 0 : index
      %449 = memref.load %arg6[%c0_226] : memref<20xf32, #tpu.memory_space<smem>>
      memref.store %448, %arg6[%c0_226] : memref<20xf32, #tpu.memory_space<smem>>
    }
    %c13_i32_25 = arith.constant 13 : i32
    return
  }
}

</mosaic_0001>

<llo_original>
// kernel: _one_pop_pallas_impl.1
$region0: #{_one_pop_pallas_impl.1}
  #allocation0 [shape = 'u32[]', space=smem, size = 0x4, offset = 0x4, fixed_abs, tag = 'smem constant byte address 0x4 - core index']
  #allocation1 [shape = 'u32[144,128]{1,0:T(1,128)}', space=vmem, size = 0x12000, scoped, tag = 'internal scratch']
  #allocation2 [shape = 'f32[20]{0:T(128)}', space=smem, size = 0x200, scoped, tag = 'scratch operand']
  #allocation3 [shape = 'f32[20]{0:T(128)}', space=smem, size = 0x200, scoped, tag = 'scratch operand']
  %s0 = inlined_call_operand.hbm [shape: f32[20], index: 0, kind: input, shape index: {}]
  %s1 = inlined_call_operand.vmem [shape: f32[20], index: 1, kind: input, shape index: {}]
  %s2 = inlined_call_operand.vmem [shape: f32[20], index: 2, kind: input, shape index: {}]
  %s3 = inlined_call_operand.vmem [shape: f32[20], index: 3, kind: input, shape index: {}]
  %s4 = inlined_call_operand.vmem [shape: f32[20], index: 4, kind: input, shape index: {}]
  %s5 = inlined_call_operand.vmem [shape: f32[13], index: 5, kind: input, shape index: {}]
  %s6 = inlined_call_operand.hbm [shape: f32[20], index: 6, kind: output, shape index: {0}]
  %s7 = inlined_call_operand.hbm [shape: f32[20], index: 7, kind: output, shape index: {1}]
  %8 = xla_tuple %s6, %s7
  %s9 = sld [smem:[#allocation0]]
  $region77: #{_one_pop_pallas_impl.1} parent=0
    _
  %s11 = ssub.s32 1, %s9
  %s12 = scalar_select 0, %s11, %s9
  $region1: #{_one_pop_pallas_impl.1} parent=0
    #allocation4 [shape = 'u8[512]{0}', space=smem, size = 0x200, scoped, tag = 'input window, operand 0, single buffered']
    #allocation5 [shape = 's32[1]{0}', space=sflag, size = 0x4, scoped, tag = 'scoped memory for _one_pop_pallas_impl.1']
    #allocation6 [shape = 's32[1]{0}', space=sflag, size = 0x4, scoped, tag = 'scoped memory for _one_pop_pallas_impl.1']
    #allocation7 [shape = 's32[1]{0}', space=sflag, size = 0x4, scoped, tag = 'scoped memory for _one_pop_pallas_impl.1']
    #allocation8 [shape = 'u8[512]{0}', space=smem, size = 0x200, scoped, tag = 'input window, operand 1, single buffered']
    #allocation9 [shape = 'u8[512]{0}', space=smem, size = 0x200, scoped, tag = 'input window, operand 2, single buffered']
    #allocation10 [shape = 's32[1]{0}', space=sflag, size = 0x4, scoped, tag = 'scoped memory for _one_pop_pallas_impl.1']
    #allocation11 [shape = 'u8[512]{0}', space=smem, size = 0x200, scoped, tag = 'input window, operand 3, single buffered']
    #allocation12 [shape = 'u8[512]{0}', space=smem, size = 0x200, scoped, tag = 'input window, operand 4, single buffered']
    #allocation13 [shape = 's32[1]{0}', space=sflag, size = 0x4, scoped, tag = 'scoped memory for _one_pop_pallas_impl.1']
    #allocation14 [shape = 'u8[512]{0}', space=smem, size = 0x200, scoped, tag = 'input window, operand 5, single buffered']
    #allocation15 [shape = 'u8[512]{0}', space=smem, size = 0x200, scoped, tag = 'output window, operand 0, single buffered']
    #allocation16 [shape = 'u8[512]{0}', space=smem, size = 0x200, scoped, tag = 'output window, operand 1, single buffered']
    #allocation17 [shape = 's32[1]{0}', space=sflag, size = 0x4, scoped, tag = 'scoped memory for _one_pop_pallas_impl.1']
    %13 = vsyncpa [#allocation5], 0
    %14 = vsyncpa [#allocation7], 0
    %15 = vsyncpa [#allocation10], 0
    %16 = vsyncpa [#allocation13], 0
    %17 = vsyncpa [#allocation6], 0
    %18 = vsyncpa [#allocation17], 0
    // Predicated region
    $region2: #{_one_pop_pallas_impl.1} parent=1 // pred_check
      _
    $region3: #{_one_pop_pallas_impl.1} parent=1 // pred_check_branch
      %20 = sbr.rel (0) target = $region5
    $region4: #{_one_pop_pallas_impl.1} parent=1 // pred_region
      %s22 = ssub.s32 16, 16
      %23 = vsyncadd [#allocation5], %s22
      %26 = dma.hbm_to_smem %s0, 16, [#allocation4], [#allocation5]
    $region5: #{_one_pop_pallas_impl.1} parent=1 // pred_fallthru
      _
    // Predicated region
    $region6: #{_one_pop_pallas_impl.1} parent=1 // pred_check
      _
    $region7: #{_one_pop_pallas_impl.1} parent=1 // pred_check_branch
      %28 = sbr.rel (0) target = $region9
    $region8: #{_one_pop_pallas_impl.1} parent=1 // pred_region
      %s30 = ssub.s32 16, 16
      %31 = vsyncadd [#allocation7], %s30
      %s33 = sshll.u32 %s1, 4
      %s34 = int_to_ptr.vmem [resolvable:$true] %s33
      %36 = dma.vmem_to_smem %s34, 16, [#allocation8], [#allocation7]
    $region9: #{_one_pop_pallas_impl.1} parent=1 // pred_fallthru
      _
    // Predicated region
    $region10: #{_one_pop_pallas_impl.1} parent=1 // pred_check
      _
    $region11: #{_one_pop_pallas_impl.1} parent=1 // pred_check_branch
      %38 = sbr.rel (0) target = $region13
    $region12: #{_one_pop_pallas_impl.1} parent=1 // pred_region
      %s40 = ssub.s32 16, 16
      %41 = vsyncadd [#allocation10], %s40
      %s43 = sshll.u32 %s2, 4
      %s44 = int_to_ptr.vmem [resolvable:$true] %s43
      %46 = dma.vmem_to_smem %s44, 16, [#allocation9], [#allocation10]
    $region13: #{_one_pop_pallas_impl.1} parent=1 // pred_fallthru
      _
    // Predicated region
    $region14: #{_one_pop_pallas_impl.1} parent=1 // pred_check
      _
    $region15: #{_one_pop_pallas_impl.1} parent=1 // pred_check_branch
      %48 = sbr.rel (0) target = $region17
    $region16: #{_one_pop_pallas_impl.1} parent=1 // pred_region
      %s50 = ssub.s32 16, 16
      %51 = vsyncadd [#allocation10], %s50
      %s53 = sshll.u32 %s3, 4
      %s54 = int_to_ptr.vmem [resolvable:$true] %s53
      %56 = dma.vmem_to_smem %s54, 16, [#allocation11], [#allocation10]
    $region17: #{_one_pop_pallas_impl.1} parent=1 // pred_fallthru
      _
    // Predicated region
    $region18: #{_one_pop_pallas_impl.1} parent=1 // pred_check
      _
    $region19: #{_one_pop_pallas_impl.1} parent=1 // pred_check_branch
      %58 = sbr.rel (0) target = $region21
    $region20: #{_one_pop_pallas_impl.1} parent=1 // pred_region
      %s60 = ssub.s32 16, 16
      %61 = vsyncadd [#allocation13], %s60
      %s63 = sshll.u32 %s4, 4
      %s64 = int_to_ptr.vmem [resolvable:$true] %s63
      %66 = dma.vmem_to_smem %s64, 16, [#allocation12], [#allocation13]
    $region21: #{_one_pop_pallas_impl.1} parent=1 // pred_fallthru
      _
    // Predicated region
    $region22: #{_one_pop_pallas_impl.1} parent=1 // pred_check
      _
    $region23: #{_one_pop_pallas_impl.1} parent=1 // pred_check_branch
      %68 = sbr.rel (0) target = $region25
    $region24: #{_one_pop_pallas_impl.1} parent=1 // pred_region
      %s70 = ssub.s32 16, 16
      %71 = vsyncadd [#allocation13], %s70
      %s73 = sshll.u32 %s5, 4
      %s74 = int_to_ptr.vmem [resolvable:$true] %s73
      %76 = dma.vmem_to_smem %s74, 16, [#allocation14], [#allocation13]
    $region25: #{_one_pop_pallas_impl.1} parent=1 // pred_fallthru
      _
    // Predicated region
    $region26: #{_one_pop_pallas_impl.1} parent=1 // pred_check
      _
    $region27: #{_one_pop_pallas_impl.1} parent=1 // pred_check_branch
      %78 = sbr.rel (0) target = $region29
    $region28: #{_one_pop_pallas_impl.1} parent=1 // pred_region
      %79 = dma.done [#allocation5], 16
    $region29: #{_one_pop_pallas_impl.1} parent=1 // pred_fallthru
      _
    // Predicated region
    $region30: #{_one_pop_pallas_impl.1} parent=1 // pred_check
      _
    $region31: #{_one_pop_pallas_impl.1} parent=1 // pred_check_branch
      %81 = sbr.rel (0) target = $region33
    $region32: #{_one_pop_pallas_impl.1} parent=1 // pred_region
      %82 = dma.done [#allocation7], 16
    $region33: #{_one_pop_pallas_impl.1} parent=1 // pred_fallthru
      _
    // Predicated region
    $region34: #{_one_pop_pallas_impl.1} parent=1 // pred_check
      _
    $region35: #{_one_pop_pallas_impl.1} parent=1 // pred_check_branch
      %84 = sbr.rel (0) target = $region37
    $region36: #{_one_pop_pallas_impl.1} parent=1 // pred_region
      %85 = dma.done [#allocation10], 16
    $region37: #{_one_pop_pallas_impl.1} parent=1 // pred_fallthru
      _
    // Predicated region
    $region38: #{_one_pop_pallas_impl.1} parent=1 // pred_check
      _
    $region39: #{_one_pop_pallas_impl.1} parent=1 // pred_check_branch
      %87 = sbr.rel (0) target = $region41
    $region40: #{_one_pop_pallas_impl.1} parent=1 // pred_region
      %88 = dma.done [#allocation10], 16
    $region41: #{_one_pop_pallas_impl.1} parent=1 // pred_fallthru
      _
    // Predicated region
    $region42: #{_one_pop_pallas_impl.1} parent=1 // pred_check
      _
    $region43: #{_one_pop_pallas_impl.1} parent=1 // pred_check_branch
      %90 = sbr.rel (0) target = $region45
    $region44: #{_one_pop_pallas_impl.1} parent=1 // pred_region
      %91 = dma.done [#allocation13], 16
    $region45: #{_one_pop_pallas_impl.1} parent=1 // pred_fallthru
      _
    // Predicated region
    $region46: #{_one_pop_pallas_impl.1} parent=1 // pred_check
      _
    $region47: #{_one_pop_pallas_impl.1} parent=1 // pred_check_branch
      %93 = sbr.rel (0) target = $region49
    $region48: #{_one_pop_pallas_impl.1} parent=1 // pred_region
      %94 = dma.done [#allocation13], 16
    $region49: #{_one_pop_pallas_impl.1} parent=1 // pred_fallthru
      _
    %95 = sfence
    %s96 = sld [smem:[#allocation4]]
    %s97 = scalar_lea.smem [#allocation15], 0
    %98 = sst [smem:[%s97]] %s96
    %s99 = sld [smem:[#allocation4 + $0x1]]
    %s100 = scalar_lea.smem [#allocation15], 1
    %101 = sst [smem:[%s100]] %s99
    %s102 = sld [smem:[#allocation4 + $0x2]]
    %s103 = scalar_lea.smem [#allocation15], 2
    %104 = sst [smem:[%s103]] %s102
    %s105 = sld [smem:[#allocation4 + $0x3]]
    %s106 = scalar_lea.smem [#allocation15], 3
    %107 = sst [smem:[%s106]] %s105
    %s108 = sld [smem:[#allocation4 + $0x4]]
    %s109 = scalar_lea.smem [#allocation15], 4
    %110 = sst [smem:[%s109]] %s108
    %s111 = sld [smem:[#allocation4 + $0x5]]
    %s112 = scalar_lea.smem [#allocation15], 5
    %113 = sst [smem:[%s112]] %s111
    %s114 = sld [smem:[#allocation4 + $0x6]]
    %s115 = scalar_lea.smem [#allocation15], 6
    %116 = sst [smem:[%s115]] %s114
    %s117 = sld [smem:[#allocation4 + $0x7]]
    %s118 = scalar_lea.smem [#allocation15], 7
    %119 = sst [smem:[%s118]] %s117
    %s120 = sld [smem:[#allocation4 + $0x8]]
    %s121 = scalar_lea.smem [#allocation15], 8
    %122 = sst [smem:[%s121]] %s120
    %s123 = sld [smem:[#allocation4 + $0x9]]
    %s124 = scalar_lea.smem [#allocation15], 9
    %125 = sst [smem:[%s124]] %s123
    %s126 = sld [smem:[#allocation4 + $0xa]]
    %s127 = scalar_lea.smem [#allocation15], 10
    %128 = sst [smem:[%s127]] %s126
    %s129 = sld [smem:[#allocation4 + $0xb]]
    %s130 = scalar_lea.smem [#allocation15], 11
    %131 = sst [smem:[%s130]] %s129
    %s132 = sld [smem:[#allocation4 + $0xc]]
    %s133 = scalar_lea.smem [#allocation15], 12
    %134 = sst [smem:[%s133]] %s132
    %s135 = sld [smem:[#allocation4 + $0xd]]
    %s136 = scalar_lea.smem [#allocation15], 13
    %137 = sst [smem:[%s136]] %s135
    %s138 = sld [smem:[#allocation4 + $0xe]]
    %s139 = scalar_lea.smem [#allocation15], 14
    %140 = sst [smem:[%s139]] %s138
    %s141 = sld [smem:[#allocation4 + $0xf]]
    %s142 = scalar_lea.smem [#allocation15], 15
    %143 = sst [smem:[%s142]] %s141
    %s144 = sld [smem:[#allocation4 + $0x10]]
    %s145 = scalar_lea.smem [#allocation15], 16
    %146 = sst [smem:[%s145]] %s144
    %s147 = sld [smem:[#allocation4 + $0x11]]
    %s148 = scalar_lea.smem [#allocation15], 17
    %149 = sst [smem:[%s148]] %s147
    %s150 = sld [smem:[#allocation4 + $0x12]]
    %s151 = scalar_lea.smem [#allocation15], 18
    %152 = sst [smem:[%s151]] %s150
    %s153 = sld [smem:[#allocation4 + $0x13]]
    %s154 = scalar_lea.smem [#allocation15], 19
    %155 = sst [smem:[%s154]] %s153
    %s156 = sld [smem:[#allocation8 + $0x1]]
    %v157 = vstv %s156
    %v158 = vrcp.pop %v157
    %s159 = vtos %v158
    %s160 = smul.f32 %s159, 0.5
    %s161 = smul.f32 %s160, 2.0
    %s162 = sld [smem:[#allocation8 + $0x2]]
    %s163 = sld [smem:[#allocation8]]
    %s164 = ssub.f32 %s162, %s163
    %v165 = vstv %s164
    %v166 = vrcp.pop %v165
    %s167 = vtos %v166
    %s168 = smul.f32 %s161, %s167
    loop: start=0, step=1, limit=13
    $region50: #{_one_pop_pallas_impl.1} parent=1 // loop_pre_header
      _
    $region51: #{_one_pop_pallas_impl.1} parent=1 // loop_header
      %s170 = sphi 0, %s174
      %p171 = scmp.ge.s32.totalorder %s170, 13
    $region52: #{_one_pop_pallas_impl.1} parent=1 // loop_header_branch
      %173 = sbr.rel (%p171) target = $region56
    $region53: #{_one_pop_pallas_impl.1} parent=1 // loop_body
      %s175 = sld [smem:[#allocation14 + %s170]]
      %v176 = vstv %s175
      %v177 = vrcp.pop %v176
      %s178 = vtos %v177
      %s179 = sld [smem:[#allocation15 + $0x1]]
      %s180 = smul.f32 %s175, %s168
      %s181 = sadd.f32 %s179, %s180
      %182 = sst [smem:[%s100]] %s181
      %p183 = scmp.eq.s32.totalorder %s170, 12
      // Predicated region
      $region57: #{_one_pop_pallas_impl.1} parent=53 // pred_check
        %p184 = pneg %p183
      $region58: #{_one_pop_pallas_impl.1} parent=53 // pred_check_branch
        %186 = sbr.rel (%p184) target = $region60
      $region59: #{_one_pop_pallas_impl.1} parent=53 // pred_region
        %s187 = sld [smem:[#allocation15]]
        %s188 = scalar_lea.smem [#allocation16], 0
        %189 = sst [smem:[%s188]] %s187
        %s190 = sld [smem:[#allocation15 + $0x1]]
        %s191 = scalar_lea.smem [#allocation16], 1
        %192 = sst [smem:[%s191]] %s190
        %s193 = sld [smem:[#allocation15 + $0x2]]
        %s194 = scalar_lea.smem [#allocation16], 2
        %195 = sst [smem:[%s194]] %s193
        %s196 = sld [smem:[#allocation15 + $0x3]]
        %s197 = scalar_lea.smem [#allocation16], 3
        %198 = sst [smem:[%s197]] %s196
        %s199 = sld [smem:[#allocation15 + $0x4]]
        %s200 = scalar_lea.smem [#allocation16], 4
        %201 = sst [smem:[%s200]] %s199
        %s202 = sld [smem:[#allocation15 + $0x5]]
        %s203 = scalar_lea.smem [#allocation16], 5
        %204 = sst [smem:[%s203]] %s202
        %s205 = sld [smem:[#allocation15 + $0x6]]
        %s206 = scalar_lea.smem [#allocation16], 6
        %207 = sst [smem:[%s206]] %s205
        %s208 = sld [smem:[#allocation15 + $0x7]]
        %s209 = scalar_lea.smem [#allocation16], 7
        %210 = sst [smem:[%s209]] %s208
        %s211 = sld [smem:[#allocation15 + $0x8]]
        %s212 = scalar_lea.smem [#allocation16], 8
        %213 = sst [smem:[%s212]] %s211
        %s214 = sld [smem:[#allocation15 + $0x9]]
        %s215 = scalar_lea.smem [#allocation16], 9
        %216 = sst [smem:[%s215]] %s214
        %s217 = sld [smem:[#allocation15 + $0xa]]
        %s218 = scalar_lea.smem [#allocation16], 10
        %219 = sst [smem:[%s218]] %s217
        %s220 = sld [smem:[#allocation15 + $0xb]]
        %s221 = scalar_lea.smem [#allocation16], 11
        %222 = sst [smem:[%s221]] %s220
        %s223 = sld [smem:[#allocation15 + $0xc]]
        %s224 = scalar_lea.smem [#allocation16], 12
        %225 = sst [smem:[%s224]] %s223
        %s226 = sld [smem:[#allocation15 + $0xd]]
        %s227 = scalar_lea.smem [#allocation16], 13
        %228 = sst [smem:[%s227]] %s226
        %s229 = sld [smem:[#allocation15 + $0xe]]
        %s230 = scalar_lea.smem [#allocation16], 14
        %231 = sst [smem:[%s230]] %s229
        %s232 = sld [smem:[#allocation15 + $0xf]]
        %s233 = scalar_lea.smem [#allocation16], 15
        %234 = sst [smem:[%s233]] %s232
        %s235 = sld [smem:[#allocation15 + $0x10]]
        %s236 = scalar_lea.smem [#allocation16], 16
        %237 = sst [smem:[%s236]] %s235
        %s238 = sld [smem:[#allocation15 + $0x11]]
        %s239 = scalar_lea.smem [#allocation16], 17
        %240 = sst [smem:[%s239]] %s238
        %s241 = sld [smem:[#allocation15 + $0x12]]
        %s242 = scalar_lea.smem [#allocation16], 18
        %243 = sst [smem:[%s242]] %s241
        %s244 = sld [smem:[#allocation15 + $0x13]]
        %s245 = scalar_lea.smem [#allocation16], 19
        %246 = sst [smem:[%s245]] %s244
      $region60: #{_one_pop_pallas_impl.1} parent=53 // pred_fallthru
        _
      %s247 = sld [smem:[#allocation11]]
      %s248 = sadd.f32 %s247, %s178
      %v249 = vstv %s248
      %v250 = vrcp.pop %v249
      %s251 = vtos %v250
      %s252 = sld [smem:[#allocation12]]
      %s253 = smul.f32 %s252, %s251
      %s254 = sld [smem:[#allocation15]]
      %s255 = smul.f32 %s254, %s178
      %s256 = smul.f32 %s255, %s251
      %s257 = scalar_lea.smem [#allocation2], 0
      %258 = sst [smem:[%s257]] %s253
      %s259 = scalar_lea.smem [#allocation3], 0
      %260 = sst [smem:[%s259]] %s256
      %s261 = sld [smem:[#allocation9 + $0x1]]
      %s262 = sld [smem:[#allocation11 + $0x1]]
      %s263 = sadd.f32 %s262, %s178
      %s264 = smul.f32 %s261, %s253
      %s265 = ssub.f32 %s263, %s264
      %v266 = vstv %s265
      %v267 = vrcp.pop %v266
      %s268 = vtos %v267
      %s269 = sld [smem:[#allocation12 + $0x1]]
      %s270 = smul.f32 %s269, %s268
      %s271 = sld [smem:[#allocation15 + $0x1]]
      %s272 = smul.f32 %s271, %s178
      %s273 = smul.f32 %s261, %s256
      %s274 = ssub.f32 %s272, %s273
      %s275 = smul.f32 %s274, %s268
      %s276 = scalar_lea.smem [#allocation2], 1
      %277 = sst [smem:[%s276]] %s270
      %s278 = scalar_lea.smem [#allocation3], 1
      %279 = sst [smem:[%s278]] %s275
      %s280 = sld [smem:[#allocation9 + $0x2]]
      %s281 = sld [smem:[#allocation11 + $0x2]]
      %s282 = sadd.f32 %s281, %s178
      %s283 = smul.f32 %s280, %s270
      %s284 = ssub.f32 %s282, %s283
      %v285 = vstv %s284
      %v286 = vrcp.pop %v285
      %s287 = vtos %v286
      %s288 = sld [smem:[#allocation12 + $0x2]]
      %s289 = smul.f32 %s288, %s287
      %s290 = sld [smem:[#allocation15 + $0x2]]
      %s291 = smul.f32 %s290, %s178
      %s292 = smul.f32 %s280, %s275
      %s293 = ssub.f32 %s291, %s292
      %s294 = smul.f32 %s293, %s287
      %s295 = scalar_lea.smem [#allocation2], 2
      %296 = sst [smem:[%s295]] %s289
      %s297 = scalar_lea.smem [#allocation3], 2
      %298 = sst [smem:[%s297]] %s294
      %s299 = sld [smem:[#allocation9 + $0x3]]
      %s300 = sld [smem:[#allocation11 + $0x3]]
      %s301 = sadd.f32 %s300, %s178
      %s302 = smul.f32 %s299, %s289
      %s303 = ssub.f32 %s301, %s302
      %v304 = vstv %s303
      %v305 = vrcp.pop %v304
      %s306 = vtos %v305
      %s307 = sld [smem:[#allocation12 + $0x3]]
      %s308 = smul.f32 %s307, %s306
      %s309 = sld [smem:[#allocation15 + $0x3]]
      %s310 = smul.f32 %s309, %s178
      %s311 = smul.f32 %s299, %s294
      %s312 = ssub.f32 %s310, %s311
      %s313 = smul.f32 %s312, %s306
      %s314 = scalar_lea.smem [#allocation2], 3
      %315 = sst [smem:[%s314]] %s308
      %s316 = scalar_lea.smem [#allocation3], 3
      %317 = sst [smem:[%s316]] %s313
      %s318 = sld [smem:[#allocation9 + $0x4]]
      %s319 = sld [smem:[#allocation11 + $0x4]]
      %s320 = sadd.f32 %s319, %s178
      %s321 = smul.f32 %s318, %s308
      %s322 = ssub.f32 %s320, %s321
      %v323 = vstv %s322
      %v324 = vrcp.pop %v323
      %s325 = vtos %v324
      %s326 = sld [smem:[#allocation12 + $0x4]]
      %s327 = smul.f32 %s326, %s325
      %s328 = sld [smem:[#allocation15 + $0x4]]
      %s329 = smul.f32 %s328, %s178
      %s330 = smul.f32 %s318, %s313
      %s331 = ssub.f32 %s329, %s330
      %s332 = smul.f32 %s331, %s325
      %s333 = scalar_lea.smem [#allocation2], 4
      %334 = sst [smem:[%s333]] %s327
      %s335 = scalar_lea.smem [#allocation3], 4
      %336 = sst [smem:[%s335]] %s332
      %s337 = sld [smem:[#allocation9 + $0x5]]
      %s338 = sld [smem:[#allocation11 + $0x5]]
      %s339 = sadd.f32 %s338, %s178
      %s340 = smul.f32 %s337, %s327
      %s341 = ssub.f32 %s339, %s340
      %v342 = vstv %s341
      %v343 = vrcp.pop %v342
      %s344 = vtos %v343
      %s345 = sld [smem:[#allocation12 + $0x5]]
      %s346 = smul.f32 %s345, %s344
      %s347 = sld [smem:[#allocation15 + $0x5]]
      %s348 = smul.f32 %s347, %s178
      %s349 = smul.f32 %s337, %s332
      %s350 = ssub.f32 %s348, %s349
      %s351 = smul.f32 %s350, %s344
      %s352 = scalar_lea.smem [#allocation2], 5
      %353 = sst [smem:[%s352]] %s346
      %s354 = scalar_lea.smem [#allocation3], 5
      %355 = sst [smem:[%s354]] %s351
      %s356 = sld [smem:[#allocation9 + $0x6]]
      %s357 = sld [smem:[#allocation11 + $0x6]]
      %s358 = sadd.f32 %s357, %s178
      %s359 = smul.f32 %s356, %s346
      %s360 = ssub.f32 %s358, %s359
      %v361 = vstv %s360
      %v362 = vrcp.pop %v361
      %s363 = vtos %v362
      %s364 = sld [smem:[#allocation12 + $0x6]]
      %s365 = smul.f32 %s364, %s363
      %s366 = sld [smem:[#allocation15 + $0x6]]
      %s367 = smul.f32 %s366, %s178
      %s368 = smul.f32 %s356, %s351
      %s369 = ssub.f32 %s367, %s368
      %s370 = smul.f32 %s369, %s363
      %s371 = scalar_lea.smem [#allocation2], 6
      %372 = sst [smem:[%s371]] %s365
      %s373 = scalar_lea.smem [#allocation3], 6
      %374 = sst [smem:[%s373]] %s370
      %s375 = sld [smem:[#allocation9 + $0x7]]
      %s376 = sld [smem:[#allocation11 + $0x7]]
      %s377 = sadd.f32 %s376, %s178
      %s378 = smul.f32 %s375, %s365
      %s379 = ssub.f32 %s377, %s378
      %v380 = vstv %s379
      %v381 = vrcp.pop %v380
      %s382 = vtos %v381
      %s383 = sld [smem:[#allocation12 + $0x7]]
      %s384 = smul.f32 %s383, %s382
      %s385 = sld [smem:[#allocation15 + $0x7]]
      %s386 = smul.f32 %s385, %s178
      %s387 = smul.f32 %s375, %s370
      %s388 = ssub.f32 %s386, %s387
      %s389 = smul.f32 %s388, %s382
      %s390 = scalar_lea.smem [#allocation2], 7
      %391 = sst [smem:[%s390]] %s384
      %s392 = scalar_lea.smem [#allocation3], 7
      %393 = sst [smem:[%s392]] %s389
      %s394 = sld [smem:[#allocation9 + $0x8]]
      %s395 = sld [smem:[#allocation11 + $0x8]]
      %s396 = sadd.f32 %s395, %s178
      %s397 = smul.f32 %s394, %s384
      %s398 = ssub.f32 %s396, %s397
      %v399 = vstv %s398
      %v400 = vrcp.pop %v399
      %s401 = vtos %v400
      %s402 = sld [smem:[#allocation12 + $0x8]]
      %s403 = smul.f32 %s402, %s401
      %s404 = sld [smem:[#allocation15 + $0x8]]
      %s405 = smul.f32 %s404, %s178
      %s406 = smul.f32 %s394, %s389
      %s407 = ssub.f32 %s405, %s406
      %s408 = smul.f32 %s407, %s401
      %s409 = scalar_lea.smem [#allocation2], 8
      %410 = sst [smem:[%s409]] %s403
      %s411 = scalar_lea.smem [#allocation3], 8
      %412 = sst [smem:[%s411]] %s408
      %s413 = sld [smem:[#allocation9 + $0x9]]
      %s414 = sld [smem:[#allocation11 + $0x9]]
      %s415 = sadd.f32 %s414, %s178
      %s416 = smul.f32 %s413, %s403
      %s417 = ssub.f32 %s415, %s416
      %v418 = vstv %s417
      %v419 = vrcp.pop %v418
      %s420 = vtos %v419
      %s421 = sld [smem:[#allocation12 + $0x9]]
      %s422 = smul.f32 %s421, %s420
      %s423 = sld [smem:[#allocation15 + $0x9]]
      %s424 = smul.f32 %s423, %s178
      %s425 = smul.f32 %s413, %s408
      %s426 = ssub.f32 %s424, %s425
      %s427 = smul.f32 %s426, %s420
      %s428 = scalar_lea.smem [#allocation2], 9
      %429 = sst [smem:[%s428]] %s422
      %s430 = scalar_lea.smem [#allocation3], 9
      %431 = sst [smem:[%s430]] %s427
      %s432 = sld [smem:[#allocation9 + $0xa]]
      %s433 = sld [smem:[#allocation11 + $0xa]]
      %s434 = sadd.f32 %s433, %s178
      %s435 = smul.f32 %s432, %s422
      %s436 = ssub.f32 %s434, %s435
      %v437 = vstv %s436
      %v438 = vrcp.pop %v437
      %s439 = vtos %v438
      %s440 = sld [smem:[#allocation12 + $0xa]]
      %s441 = smul.f32 %s440, %s439
      %s442 = sld [smem:[#allocation15 + $0xa]]
      %s443 = smul.f32 %s442, %s178
      %s444 = smul.f32 %s432, %s427
      %s445 = ssub.f32 %s443, %s444
      %s446 = smul.f32 %s445, %s439
      %s447 = scalar_lea.smem [#allocation2], 10
      %448 = sst [smem:[%s447]] %s441
      %s449 = scalar_lea.smem [#allocation3], 10
      %450 = sst [smem:[%s449]] %s446
      %s451 = sld [smem:[#allocation9 + $0xb]]
      %s452 = sld [smem:[#allocation11 + $0xb]]
      %s453 = sadd.f32 %s452, %s178
      %s454 = smul.f32 %s451, %s441
      %s455 = ssub.f32 %s453, %s454
      %v456 = vstv %s455
      %v457 = vrcp.pop %v456
      %s458 = vtos %v457
      %s459 = sld [smem:[#allocation12 + $0xb]]
      %s460 = smul.f32 %s459, %s458
      %s461 = sld [smem:[#allocation15 + $0xb]]
      %s462 = smul.f32 %s461, %s178
      %s463 = smul.f32 %s451, %s446
      %s464 = ssub.f32 %s462, %s463
      %s465 = smul.f32 %s464, %s458
      %s466 = scalar_lea.smem [#allocation2], 11
      %467 = sst [smem:[%s466]] %s460
      %s468 = scalar_lea.smem [#allocation3], 11
      %469 = sst [smem:[%s468]] %s465
      %s470 = sld [smem:[#allocation9 + $0xc]]
      %s471 = sld [smem:[#allocation11 + $0xc]]
      %s472 = sadd.f32 %s471, %s178
      %s473 = smul.f32 %s470, %s460
      %s474 = ssub.f32 %s472, %s473
      %v475 = vstv %s474
      %v476 = vrcp.pop %v475
      %s477 = vtos %v476
      %s478 = sld [smem:[#allocation12 + $0xc]]
      %s479 = smul.f32 %s478, %s477
      %s480 = sld [smem:[#allocation15 + $0xc]]
      %s481 = smul.f32 %s480, %s178
      %s482 = smul.f32 %s470, %s465
      %s483 = ssub.f32 %s481, %s482
      %s484 = smul.f32 %s483, %s477
      %s485 = scalar_lea.smem [#allocation2], 12
      %486 = sst [smem:[%s485]] %s479
      %s487 = scalar_lea.smem [#allocation3], 12
      %488 = sst [smem:[%s487]] %s484
      %s489 = sld [smem:[#allocation9 + $0xd]]
      %s490 = sld [smem:[#allocation11 + $0xd]]
      %s491 = sadd.f32 %s490, %s178
      %s492 = smul.f32 %s489, %s479
      %s493 = ssub.f32 %s491, %s492
      %v494 = vstv %s493
      %v495 = vrcp.pop %v494
      %s496 = vtos %v495
      %s497 = sld [smem:[#allocation12 + $0xd]]
      %s498 = smul.f32 %s497, %s496
      %s499 = sld [smem:[#allocation15 + $0xd]]
      %s500 = smul.f32 %s499, %s178
      %s501 = smul.f32 %s489, %s484
      %s502 = ssub.f32 %s500, %s501
      %s503 = smul.f32 %s502, %s496
      %s504 = scalar_lea.smem [#allocation2], 13
      %505 = sst [smem:[%s504]] %s498
      %s506 = scalar_lea.smem [#allocation3], 13
      %507 = sst [smem:[%s506]] %s503
      %s508 = sld [smem:[#allocation9 + $0xe]]
      %s509 = sld [smem:[#allocation11 + $0xe]]
      %s510 = sadd.f32 %s509, %s178
      %s511 = smul.f32 %s508, %s498
      %s512 = ssub.f32 %s510, %s511
      %v513 = vstv %s512
      %v514 = vrcp.pop %v513
      %s515 = vtos %v514
      %s516 = sld [smem:[#allocation12 + $0xe]]
      %s517 = smul.f32 %s516, %s515
      %s518 = sld [smem:[#allocation15 + $0xe]]
      %s519 = smul.f32 %s518, %s178
      %s520 = smul.f32 %s508, %s503
      %s521 = ssub.f32 %s519, %s520
      %s522 = smul.f32 %s521, %s515
      %s523 = scalar_lea.smem [#allocation2], 14
      %524 = sst [smem:[%s523]] %s517
      %s525 = scalar_lea.smem [#allocation3], 14
      %526 = sst [smem:[%s525]] %s522
      %s527 = sld [smem:[#allocation9 + $0xf]]
      %s528 = sld [smem:[#allocation11 + $0xf]]
      %s529 = sadd.f32 %s528, %s178
      %s530 = smul.f32 %s527, %s517
      %s531 = ssub.f32 %s529, %s530
      %v532 = vstv %s531
      %v533 = vrcp.pop %v532
      %s534 = vtos %v533
      %s535 = sld [smem:[#allocation12 + $0xf]]
      %s536 = smul.f32 %s535, %s534
      %s537 = sld [smem:[#allocation15 + $0xf]]
      %s538 = smul.f32 %s537, %s178
      %s539 = smul.f32 %s527, %s522
      %s540 = ssub.f32 %s538, %s539
      %s541 = smul.f32 %s540, %s534
      %s542 = scalar_lea.smem [#allocation2], 15
      %543 = sst [smem:[%s542]] %s536
      %s544 = scalar_lea.smem [#allocation3], 15
      %545 = sst [smem:[%s544]] %s541
      %s546 = sld [smem:[#allocation9 + $0x10]]
      %s547 = sld [smem:[#allocation11 + $0x10]]
      %s548 = sadd.f32 %s547, %s178
      %s549 = smul.f32 %s546, %s536
      %s550 = ssub.f32 %s548, %s549
      %v551 = vstv %s550
      %v552 = vrcp.pop %v551
      %s553 = vtos %v552
      %s554 = sld [smem:[#allocation12 + $0x10]]
      %s555 = smul.f32 %s554, %s553
      %s556 = sld [smem:[#allocation15 + $0x10]]
      %s557 = smul.f32 %s556, %s178
      %s558 = smul.f32 %s546, %s541
      %s559 = ssub.f32 %s557, %s558
      %s560 = smul.f32 %s559, %s553
      %s561 = scalar_lea.smem [#allocation2], 16
      %562 = sst [smem:[%s561]] %s555
      %s563 = scalar_lea.smem [#allocation3], 16
      %564 = sst [smem:[%s563]] %s560
      %s565 = sld [smem:[#allocation9 + $0x11]]
      %s566 = sld [smem:[#allocation11 + $0x11]]
      %s567 = sadd.f32 %s566, %s178
      %s568 = smul.f32 %s565, %s555
      %s569 = ssub.f32 %s567, %s568
      %v570 = vstv %s569
      %v571 = vrcp.pop %v570
      %s572 = vtos %v571
      %s573 = sld [smem:[#allocation12 + $0x11]]
      %s574 = smul.f32 %s573, %s572
      %s575 = sld [smem:[#allocation15 + $0x11]]
      %s576 = smul.f32 %s575, %s178
      %s577 = smul.f32 %s565, %s560
      %s578 = ssub.f32 %s576, %s577
      %s579 = smul.f32 %s578, %s572
      %s580 = scalar_lea.smem [#allocation2], 17
      %581 = sst [smem:[%s580]] %s574
      %s582 = scalar_lea.smem [#allocation3], 17
      %583 = sst [smem:[%s582]] %s579
      %s584 = sld [smem:[#allocation9 + $0x12]]
      %s585 = sld [smem:[#allocation11 + $0x12]]
      %s586 = sadd.f32 %s585, %s178
      %s587 = smul.f32 %s584, %s574
      %s588 = ssub.f32 %s586, %s587
      %v589 = vstv %s588
      %v590 = vrcp.pop %v589
      %s591 = vtos %v590
      %s592 = sld [smem:[#allocation12 + $0x12]]
      %s593 = smul.f32 %s592, %s591
      %s594 = sld [smem:[#allocation15 + $0x12]]
      %s595 = smul.f32 %s594, %s178
      %s596 = smul.f32 %s584, %s579
      %s597 = ssub.f32 %s595, %s596
      %s598 = smul.f32 %s597, %s591
      %s599 = scalar_lea.smem [#allocation2], 18
      %600 = sst [smem:[%s599]] %s593
      %s601 = scalar_lea.smem [#allocation3], 18
      %602 = sst [smem:[%s601]] %s598
      %s603 = sld [smem:[#allocation9 + $0x13]]
      %s604 = sld [smem:[#allocation11 + $0x13]]
      %s605 = sadd.f32 %s604, %s178
      %s606 = smul.f32 %s603, %s593
      %s607 = ssub.f32 %s605, %s606
      %v608 = vstv %s607
      %v609 = vrcp.pop %v608
      %s610 = vtos %v609
      %s611 = sld [smem:[#allocation12 + $0x13]]
      %s612 = smul.f32 %s611, %s610
      %s613 = sld [smem:[#allocation15 + $0x13]]
      %s614 = smul.f32 %s613, %s178
      %s615 = smul.f32 %s603, %s598
      %s616 = ssub.f32 %s614, %s615
      %s617 = smul.f32 %s616, %s610
      %s618 = scalar_lea.smem [#allocation2], 19
      %619 = sst [smem:[%s618]] %s612
      %s620 = scalar_lea.smem [#allocation3], 19
      %621 = sst [smem:[%s620]] %s617
      %622 = sst [smem:[%s154]] %s617
      %s623 = sld [smem:[#allocation3 + $0x12]]
      %s624 = sld [smem:[#allocation2 + $0x12]]
      %s625 = smul.f32 %s624, %s617
      %s626 = ssub.f32 %s623, %s625
      %627 = sst [smem:[%s151]] %s626
      %s628 = sld [smem:[#allocation3 + $0x11]]
      %s629 = sld [smem:[#allocation2 + $0x11]]
      %s630 = smul.f32 %s629, %s626
      %s631 = ssub.f32 %s628, %s630
      %632 = sst [smem:[%s148]] %s631
      %s633 = sld [smem:[#allocation3 + $0x10]]
      %s634 = sld [smem:[#allocation2 + $0x10]]
      %s635 = smul.f32 %s634, %s631
      %s636 = ssub.f32 %s633, %s635
      %637 = sst [smem:[%s145]] %s636
      %s638 = sld [smem:[#allocation3 + $0xf]]
      %s639 = sld [smem:[#allocation2 + $0xf]]
      %s640 = smul.f32 %s639, %s636
      %s641 = ssub.f32 %s638, %s640
      %642 = sst [smem:[%s142]] %s641
      %s643 = sld [smem:[#allocation3 + $0xe]]
      %s644 = sld [smem:[#allocation2 + $0xe]]
      %s645 = smul.f32 %s644, %s641
      %s646 = ssub.f32 %s643, %s645
      %647 = sst [smem:[%s139]] %s646
      %s648 = sld [smem:[#allocation3 + $0xd]]
      %s649 = sld [smem:[#allocation2 + $0xd]]
      %s650 = smul.f32 %s649, %s646
      %s651 = ssub.f32 %s648, %s650
      %652 = sst [smem:[%s136]] %s651
      %s653 = sld [smem:[#allocation3 + $0xc]]
      %s654 = sld [smem:[#allocation2 + $0xc]]
      %s655 = smul.f32 %s654, %s651
      %s656 = ssub.f32 %s653, %s655
      %657 = sst [smem:[%s133]] %s656
      %s658 = sld [smem:[#allocation3 + $0xb]]
      %s659 = sld [smem:[#allocation2 + $0xb]]
      %s660 = smul.f32 %s659, %s656
      %s661 = ssub.f32 %s658, %s660
      %662 = sst [smem:[%s130]] %s661
      %s663 = sld [smem:[#allocation3 + $0xa]]
      %s664 = sld [smem:[#allocation2 + $0xa]]
      %s665 = smul.f32 %s664, %s661
      %s666 = ssub.f32 %s663, %s665
      %667 = sst [smem:[%s127]] %s666
      %s668 = sld [smem:[#allocation3 + $0x9]]
      %s669 = sld [smem:[#allocation2 + $0x9]]
      %s670 = smul.f32 %s669, %s666
      %s671 = ssub.f32 %s668, %s670
      %672 = sst [smem:[%s124]] %s671
      %s673 = sld [smem:[#allocation3 + $0x8]]
      %s674 = sld [smem:[#allocation2 + $0x8]]
      %s675 = smul.f32 %s674, %s671
      %s676 = ssub.f32 %s673, %s675
      %677 = sst [smem:[%s121]] %s676
      %s678 = sld [smem:[#allocation3 + $0x7]]
      %s679 = sld [smem:[#allocation2 + $0x7]]
      %s680 = smul.f32 %s679, %s676
      %s681 = ssub.f32 %s678, %s680
      %682 = sst [smem:[%s118]] %s681
      %s683 = sld [smem:[#allocation3 + $0x6]]
      %s684 = sld [smem:[#allocation2 + $0x6]]
      %s685 = smul.f32 %s684, %s681
      %s686 = ssub.f32 %s683, %s685
      %687 = sst [smem:[%s115]] %s686
      %s688 = sld [smem:[#allocation3 + $0x5]]
      %s689 = sld [smem:[#allocation2 + $0x5]]
      %s690 = smul.f32 %s689, %s686
      %s691 = ssub.f32 %s688, %s690
      %692 = sst [smem:[%s112]] %s691
      %s693 = sld [smem:[#allocation3 + $0x4]]
      %s694 = sld [smem:[#allocation2 + $0x4]]
      %s695 = smul.f32 %s694, %s691
      %s696 = ssub.f32 %s693, %s695
      %697 = sst [smem:[%s109]] %s696
      %s698 = sld [smem:[#allocation3 + $0x3]]
      %s699 = sld [smem:[#allocation2 + $0x3]]
      %s700 = smul.f32 %s699, %s696
      %s701 = ssub.f32 %s698, %s700
      %702 = sst [smem:[%s106]] %s701
      %s703 = sld [smem:[#allocation3 + $0x2]]
      %s704 = sld [smem:[#allocation2 + $0x2]]
      %s705 = smul.f32 %s704, %s701
      %s706 = ssub.f32 %s703, %s705
      %707 = sst [smem:[%s103]] %s706
      %s708 = sld [smem:[#allocation3 + $0x1]]
      %s709 = sld [smem:[#allocation2 + $0x1]]
      %s710 = smul.f32 %s709, %s706
      %s711 = ssub.f32 %s708, %s710
      %712 = sst [smem:[%s100]] %s711
      %s713 = sld [smem:[#allocation3]]
      %s714 = sld [smem:[#allocation2]]
      %s715 = smul.f32 %s714, %s711
      %s716 = ssub.f32 %s713, %s715
      %717 = sst [smem:[%s97]] %s716
    $region54: #{_one_pop_pallas_impl.1} parent=1 // loop_footer
      %s174 = sadd.s32 1, %s170
    $region55: #{_one_pop_pallas_impl.1} parent=1 // loop_footer_branch
      %169 = sbr.rel target = $region51
    $region56: #{_one_pop_pallas_impl.1} parent=1 // loop_exit
      _
    // Predicated region
    $region61: #{_one_pop_pallas_impl.1} parent=1 // pred_check
      _
    $region62: #{_one_pop_pallas_impl.1} parent=1 // pred_check_branch
      %719 = sbr.rel (0) target = $region64
    $region63: #{_one_pop_pallas_impl.1} parent=1 // pred_region
      %s721 = ssub.s32 16, 16
      %722 = vsyncadd [#allocation6], %s721
      %725 = dma.smem_to_hbm [#allocation15], 16, %s6, [#allocation6]
    $region64: #{_one_pop_pallas_impl.1} parent=1 // pred_fallthru
      _
    // Predicated region
    $region65: #{_one_pop_pallas_impl.1} parent=1 // pred_check
      _
    $region66: #{_one_pop_pallas_impl.1} parent=1 // pred_check_branch
      %727 = sbr.rel (0) target = $region68
    $region67: #{_one_pop_pallas_impl.1} parent=1 // pred_region
      %s729 = ssub.s32 16, 16
      %730 = vsyncadd [#allocation17], %s729
      %733 = dma.smem_to_hbm [#allocation16], 16, %s7, [#allocation17]
    $region68: #{_one_pop_pallas_impl.1} parent=1 // pred_fallthru
      _
    // Predicated region
    $region69: #{_one_pop_pallas_impl.1} parent=1 // pred_check
      _
    $region70: #{_one_pop_pallas_impl.1} parent=1 // pred_check_branch
      %735 = sbr.rel (0) target = $region72
    $region71: #{_one_pop_pallas_impl.1} parent=1 // pred_region
      %736 = dma.done [#allocation6], 16
    $region72: #{_one_pop_pallas_impl.1} parent=1 // pred_fallthru
      _
    // Predicated region
    $region73: #{_one_pop_pallas_impl.1} parent=1 // pred_check
      _
    $region74: #{_one_pop_pallas_impl.1} parent=1 // pred_check_branch
      %738 = sbr.rel (0) target = $region76
    $region75: #{_one_pop_pallas_impl.1} parent=1 // pred_region
      %739 = dma.done [#allocation17], 16
    $region76: #{_one_pop_pallas_impl.1} parent=1 // pred_fallthru
      _
    %740 = sfence
    %741 = vsyncpa [#allocation5], 1
    %742 = vsyncpa [#allocation6], 1
    %743 = vsyncpa [#allocation17], 1
    %744 = vsyncpa [#allocation7], 1
    %745 = vsyncpa [#allocation10], 1
    %746 = vsyncpa [#allocation13], 1

</llo_original>
